<compile_context>
chip_gen: v7x
topology: tpu7x:2x2x1
jax: 0.10.0
libtpu: 0.0.40
codegen_flags: <defaults>
</compile_context>

<pallas_src>
import functools

import jax
import jax.numpy as jnp
from jax.experimental import pallas as pl
from jax.experimental.pallas import tpu as pltpu

MULTI = 5  # MutanLayer(dim, 5)


def _round_up(x, m):
    return ((x + m - 1) // m) * m


def mutan_fusion_kernel(e_ref, r_ref, w1_ref, b1_ref, w2_ref, b2_ref, fused_ref):
    """Grid point i: one batch tile.

    e_ref, r_ref : (TB, Dp)           bf16
    w*_ref       : (Dp, MULTI*Dp)     bf16  (heads stacked along the out axis, lane-aligned)
    b*_ref       : (1, MULTI*Dp)      f32
    fused_ref    : (TB, Dp)           bf16  (MUTAN-fused activations; pad cols are zero)
    """
    dp = fused_ref.shape[1]

    x1 = jnp.dot(e_ref[...], w1_ref[...],
                 preferred_element_type=jnp.float32)              # (TB, 5*Dp)
    x1 = jnp.maximum(x1 + b1_ref[...], 0.0)
    x2 = jnp.dot(r_ref[...], w2_ref[...],
                 preferred_element_type=jnp.float32)              # (TB, 5*Dp)
    x2 = jnp.maximum(x2 + b2_ref[...], 0.0)
    prod = x1 * x2                                                # (TB, 5*Dp)

    # 5-way head sum over lane-aligned static slices (pure VALU adds).
    acc = prod[:, 0:dp]
    for k in range(1, MULTI):                                     # static unroll
        acc = acc + prod[:, k * dp:(k + 1) * dp]
    fused_ref[...] = jnp.maximum(acc, 0.0).astype(fused_ref.dtype)


def mutan_score_kernel(fused_ref, et_ref, o_ref):
    """Grid point (i, j): batch tile i x entity tile j.

    fused_ref : (TB, Dp)  bf16
    et_ref    : (Dp, TN)  bf16  (entity matrix, pre-transposed, zero-padded rows)
    o_ref     : (TB, TN)  out_dtype
    """
    scores = jnp.dot(fused_ref[...], et_ref[...],
                     preferred_element_type=jnp.float32)          # (TB, TN) f32
    # sigmoid(x) == 0.5 * (tanh(0.5 * x) + 1): one EUP op per element.
    o_ref[...] = (0.5 * (jnp.tanh(0.5 * scores) + 1.0)).astype(o_ref.dtype)


@functools.partial(jax.jit, static_argnames=("tile_b", "tile_n", "out_dtype"))
def mutan_forward(e_embed, r_embed, w1, b1, w2, b2, ent_t, *,
                  tile_b=256, tile_n=2048, out_dtype=jnp.bfloat16):
    """e_embed/r_embed: (B, D); w1/w2: (MULTI, D, D) in (in,out) layout;
    b1/b2: (MULTI, D); ent_t: (D, N).  Returns (B, N) sigmoid scores."""
    B, D = e_embed.shape
    N = ent_t.shape[1]
    mxu_dtype = jnp.bfloat16

    # --- tile / padding math (guards non-divisible B, N and non-128 D) ---
    D_pad = _round_up(D, 128)                                # lane-aligned feature dim
    tb = min(_round_up(tile_b, 16), _round_up(B, 16))        # bf16 sublane pack
    tn = min(_round_up(tile_n, 128), _round_up(N, 128))      # lane-dense output tile
    B_pad = _round_up(B, tb)
    N_pad = _round_up(N, tn)
    n_bt = B_pad // tb
    n_nt = N_pad // tn

    # --- one-time parameter packing (plain JAX; would be pre-packed in prod) ---
    # Pad each head's in/out dims to D_pad, then stack so that
    #   stacked[:, k*D_pad + j] == w[k][:, j]  ->  x @ stacked == concat_k(x @ w[k]) (lane-aligned).
    w1p = jnp.pad(w1, ((0, 0), (0, D_pad - D), (0, D_pad - D)))
    w2p = jnp.pad(w2, ((0, 0), (0, D_pad - D), (0, D_pad - D)))
    w1s = jnp.transpose(w1p, (1, 0, 2)).reshape(D_pad, MULTI * D_pad).astype(mxu_dtype)
    w2s = jnp.transpose(w2p, (1, 0, 2)).reshape(D_pad, MULTI * D_pad).astype(mxu_dtype)
    b1s = jnp.pad(b1, ((0, 0), (0, D_pad - D))).reshape(1, MULTI * D_pad).astype(jnp.float32)
    b2s = jnp.pad(b2, ((0, 0), (0, D_pad - D))).reshape(1, MULTI * D_pad).astype(jnp.float32)

    e_p = jnp.pad(e_embed.astype(mxu_dtype), ((0, B_pad - B), (0, D_pad - D)))
    r_p = jnp.pad(r_embed.astype(mxu_dtype), ((0, B_pad - B), (0, D_pad - D)))
    et_p = jnp.pad(ent_t.astype(mxu_dtype), ((0, D_pad - D), (0, N_pad - N)))

    vmem_cap = 48 * 1024 * 1024   # conservative for v7x's 64 MiB VMEM; fine on v5e/v6e

    # --- stage 1: MUTAN fusion, one grid axis over batch tiles (parallel) ---
    fused = pl.pallas_call(
        mutan_fusion_kernel,
        out_shape=jax.ShapeDtypeStruct((B_pad, D_pad), mxu_dtype),
        grid_spec=pltpu.PrefetchScalarGridSpec(
            num_scalar_prefetch=0,
            grid=(n_bt,),
            in_specs=[
                pl.BlockSpec((tb, D_pad), lambda i: (i, 0)),              # e
                pl.BlockSpec((tb, D_pad), lambda i: (i, 0)),              # r
                pl.BlockSpec((D_pad, MULTI * D_pad), lambda i: (0, 0)),   # W1 stacked
                pl.BlockSpec((1, MULTI * D_pad), lambda i: (0, 0)),       # b1 stacked
                pl.BlockSpec((D_pad, MULTI * D_pad), lambda i: (0, 0)),   # W2 stacked
                pl.BlockSpec((1, MULTI * D_pad), lambda i: (0, 0)),       # b2 stacked
            ],
            out_specs=pl.BlockSpec((tb, D_pad), lambda i: (i, 0)),
        ),
        compiler_params=pltpu.CompilerParams(
            dimension_semantics=("parallel",),
            vmem_limit_bytes=vmem_cap,
        ),
        cost_estimate=pl.CostEstimate(
            flops=2 * 2 * B_pad * D_pad * MULTI * D_pad,
            transcendentals=0,
            bytes_accessed=(2 * B_pad * D_pad * 2            # e, r reads
                            + 2 * D_pad * MULTI * D_pad * 2  # W1, W2 reads
                            + 2 * MULTI * D_pad * 4          # biases
                            + B_pad * D_pad * 2),            # fused writeback
        ),
    )(e_p, r_p, w1s, b1s, w2s, b2s)

    # --- stage 2: entity scoring, 2-D grid, both axes parallel (megacore) ---
    out_bytes = jnp.dtype(out_dtype).itemsize
    out = pl.pallas_call(
        mutan_score_kernel,
        out_shape=jax.ShapeDtypeStruct((B_pad, N_pad), out_dtype),
        grid_spec=pltpu.PrefetchScalarGridSpec(
            num_scalar_prefetch=0,
            grid=(n_bt, n_nt),
            in_specs=[
                pl.BlockSpec((tb, D_pad), lambda i, j: (i, 0)),           # fused tile
                pl.BlockSpec((D_pad, tn), lambda i, j: (0, j)),           # E^T tile
            ],
            out_specs=pl.BlockSpec((tb, tn), lambda i, j: (i, j)),
        ),
        compiler_params=pltpu.CompilerParams(
            dimension_semantics=("parallel", "parallel"),
            vmem_limit_bytes=vmem_cap,
        ),
        cost_estimate=pl.CostEstimate(
            flops=2 * B_pad * D_pad * N_pad,
            transcendentals=B_pad * N_pad,
            bytes_accessed=(n_bt * D_pad * N_pad * 2         # E^T streamed per batch tile
                            + n_nt * B_pad * D_pad * 2       # fused re-read per N tile
                            + B_pad * N_pad * out_bytes),    # score writeback
        ),
    )(fused, et_p)

    return out[:B, :N]


def reference_forward(e_embed, r_embed, w1, b1, w2, b2, ent_t, *, cast=None):
    """Pure-JAX reference (mirrors the PyTorch forward in eval mode).

    cast=jnp.bfloat16 mimics the kernel's bf16 MXU inputs / bf16 fused
    activations (f32 accumulation); cast=None is exact f32 semantics.
    """
    if cast is not None:
        f = lambda x: x.astype(cast).astype(jnp.float32)
    else:
        f = lambda x: x.astype(jnp.float32)
    e = f(e_embed)
    r = f(r_embed)
    acc = jnp.zeros_like(e)
    for k in range(MULTI):
        x1 = jax.nn.relu(e @ f(w1[k]) + b1[k].astype(jnp.float32))
        x2 = jax.nn.relu(r @ f(w2[k]) + b2[k].astype(jnp.float32))
        acc = acc + x1 * x2
    fused = jax.nn.relu(acc)
    if cast is not None:
        fused = fused.astype(cast).astype(jnp.float32)
    return jax.nn.sigmoid(fused @ f(ent_t))


def xavier_normal(key, shape):
    fan_in, fan_out = shape[-1], shape[-2]
    std = (2.0 / (fan_in + fan_out)) ** 0.5
    return std * jax.random.normal(key, shape, dtype=jnp.float32)


if __name__ == "__main__":
    # Small, self-consistent shapes.  Non-divisible B and N exercise padding;
    # the small tile overrides exercise the 2-D scoring grid (2 x 3 tiles) and
    # the 2-tile fusion grid.
    num_entities = 300
    num_relations = 8
    dim = 32          # args.dim == args.r_dim
    batch = 20

    key = jax.random.PRNGKey(0)
    k_ent, k_rel, k_w1, k_b1, k_w2, k_b2, k_idx = jax.random.split(key, 7)

    # Parameters (deterministic synthetic init).
    entity_emb = xavier_normal(k_ent, (num_entities, dim))            # nn.Embedding weight
    relation_emb = xavier_normal(k_rel, (2 * num_relations, dim))     # nn.Embedding weight
    # Linear weights stored already-transposed to (in, out) so x @ W == torch x @ W.T.
    w1 = 0.1 * jax.random.normal(k_w1, (MULTI, dim, dim), dtype=jnp.float32)
    b1 = 0.1 * jax.random.normal(k_b1, (MULTI, dim), dtype=jnp.float32)
    w2 = 0.1 * jax.random.normal(k_w2, (MULTI, dim, dim), dtype=jnp.float32)
    b2 = 0.1 * jax.random.normal(k_b2, (MULTI, dim), dtype=jnp.float32)

    # batch_inputs[:, 0] = head entity ids, batch_inputs[:, 1] = relation ids
    heads = jax.random.randint(k_idx, (batch,), 0, num_entities)
    rels = jax.random.randint(jax.random.fold_in(k_idx, 1), (batch,), 0,
                              2 * num_relations)
    batch_inputs = jnp.stack([heads, rels], axis=1)                   # (B, 2) int32

    # Embedding lookups (glue, plain JAX gather).
    e_embed = entity_emb[batch_inputs[:, 0]]                          # (B, D)
    r_embed = relation_emb[batch_inputs[:, 1]]                        # (B, D)
    ent_t = entity_emb.T                                              # (D, N)

    # References.
    ref_bf16 = reference_forward(e_embed, r_embed, w1, b1, w2, b2, ent_t,
                                 cast=jnp.bfloat16)
    ref_f32 = reference_forward(e_embed, r_embed, w1, b1, w2, b2, ent_t)

    # --- run 1: default fast path (bf16 scores) with small tiles to exercise the grid ---
    pred_bf16 = mutan_forward(e_embed, r_embed, w1, b1, w2, b2, ent_t,
                              tile_b=16, tile_n=128)
    pred_bf16 = jax.block_until_ready(pred_bf16)
    assert pred_bf16.shape == (batch, num_entities)
    assert pred_bf16.dtype == jnp.bfloat16
    p = pred_bf16.astype(jnp.float32)
    assert jnp.allclose(p, ref_bf16, atol=1e-2, rtol=0.0), \
        "bf16-output mismatch vs bf16-input reference"
    assert jnp.allclose(p, ref_f32, atol=3e-2, rtol=0.0), \
        "bf16-output mismatch vs f32 reference"

    # --- run 2: default big tiles, f32 output (tight numeric check of the math path) ---
    pred_f32 = mutan_forward(e_embed, r_embed, w1, b1, w2, b2, ent_t,
                             out_dtype=jnp.float32)
    pred_f32 = jax.block_until_ready(pred_f32)
    assert pred_f32.shape == (batch, num_entities)
    assert jnp.allclose(pred_f32, ref_bf16, atol=1e-4, rtol=1e-4), \
        "f32-output mismatch vs bf16-input reference"
    assert jnp.allclose(pred_f32, ref_f32, atol=3e-2, rtol=0.0), \
        "f32-output mismatch vs f32 reference"

    print("KERNEL_OK")
</pallas_src>

<mosaic_0001>
module attributes {stable_mosaic.version = 11 : i64} {
  func.func @mutan_fusion_kernel(%arg0: i32, %arg1: memref<16x128xbf16, #tpu.memory_space<vmem>>, %arg2: memref<16x128xbf16, #tpu.memory_space<vmem>>, %arg3: memref<128x640xbf16, #tpu.memory_space<vmem>>, %arg4: memref<1x640xf32, #tpu.memory_space<vmem>>, %arg5: memref<128x640xbf16, #tpu.memory_space<vmem>>, %arg6: memref<1x640xf32, #tpu.memory_space<vmem>>, %arg7: memref<16x128xbf16, #tpu.memory_space<vmem>>) attributes {dimension_semantics = [#tpu.dimension_semantics<parallel>], iteration_bounds = array<i64: 2>, scalar_prefetch = 0 : i64, scratch_operands = 0 : i64, tpu.core_type = #tpu.core_type<tc>, window_params = [{transform_indices = @transform_0, window_bounds = array<i64: 16, 128>}, {transform_indices = @transform_1, window_bounds = array<i64: 16, 128>}, {pipeline_mode = #tpu.pipeline_mode<synchronous>, transform_indices = @transform_2, window_bounds = array<i64: 128, 640>}, {pipeline_mode = #tpu.pipeline_mode<synchronous>, transform_indices = @transform_3, window_bounds = array<i64: 1, 640>}, {pipeline_mode = #tpu.pipeline_mode<synchronous>, transform_indices = @transform_4, window_bounds = array<i64: 128, 640>}, {pipeline_mode = #tpu.pipeline_mode<synchronous>, transform_indices = @transform_5, window_bounds = array<i64: 1, 640>}, {transform_indices = @transform_6, window_bounds = array<i64: 16, 128>}]} {
    %c0 = arith.constant 0 : index
    %c0_0 = arith.constant 0 : index
    %0 = vector.load %arg1[%c0, %c0_0] : memref<16x128xbf16, #tpu.memory_space<vmem>>, vector<16x128xbf16>
    %c0_1 = arith.constant 0 : index
    %c0_2 = arith.constant 0 : index
    %1 = vector.load %arg3[%c0_1, %c0_2] : memref<128x640xbf16, #tpu.memory_space<vmem>>, vector<128x640xbf16>
    %cst = arith.constant dense<0.000000e+00> : vector<16x640xf32>
    %2 = tpu.matmul %0, %1, %cst {dimension_numbers = #tpu.dot_dimension_numbers<[1], [0], [0], [1], [0, 0, 1, 1], [], []>} : vector<16x128xbf16>, vector<128x640xbf16>, vector<16x640xf32> -> vector<16x640xf32>
    %c0_3 = arith.constant 0 : index
    %c0_4 = arith.constant 0 : index
    %3 = vector.load %arg4[%c0_3, %c0_4] : memref<1x640xf32, #tpu.memory_space<vmem>>, vector<1x640xf32>
    %4 = vector.broadcast %3 : vector<1x640xf32> to vector<16x640xf32>
    %5 = arith.addf %2, %4 : vector<16x640xf32>
    %cst_5 = arith.constant 0.000000e+00 : f32
    %6 = vector.broadcast %cst_5 : f32 to vector<16x640xf32>
    %7 = arith.maximumf %5, %6 : vector<16x640xf32>
    %c0_6 = arith.constant 0 : index
    %c0_7 = arith.constant 0 : index
    %8 = vector.load %arg2[%c0_6, %c0_7] : memref<16x128xbf16, #tpu.memory_space<vmem>>, vector<16x128xbf16>
    %c0_8 = arith.constant 0 : index
    %c0_9 = arith.constant 0 : index
    %9 = vector.load %arg5[%c0_8, %c0_9] : memref<128x640xbf16, #tpu.memory_space<vmem>>, vector<128x640xbf16>
    %cst_10 = arith.constant dense<0.000000e+00> : vector<16x640xf32>
    %10 = tpu.matmul %8, %9, %cst_10 {dimension_numbers = #tpu.dot_dimension_numbers<[1], [0], [0], [1], [0, 0, 1, 1], [], []>} : vector<16x128xbf16>, vector<128x640xbf16>, vector<16x640xf32> -> vector<16x640xf32>
    %c0_11 = arith.constant 0 : index
    %c0_12 = arith.constant 0 : index
    %11 = vector.load %arg6[%c0_11, %c0_12] : memref<1x640xf32, #tpu.memory_space<vmem>>, vector<1x640xf32>
    %12 = vector.broadcast %11 : vector<1x640xf32> to vector<16x640xf32>
    %13 = arith.addf %10, %12 : vector<16x640xf32>
    %cst_13 = arith.constant 0.000000e+00 : f32
    %14 = vector.broadcast %cst_13 : f32 to vector<16x640xf32>
    %15 = arith.maximumf %13, %14 : vector<16x640xf32>
    %16 = arith.mulf %7, %15 : vector<16x640xf32>
    %17 = vector.extract_strided_slice %16 {offsets = [0, 0], sizes = [16, 128], strides = [1, 1]} : vector<16x640xf32> to vector<16x128xf32>
    %18 = vector.extract_strided_slice %16 {offsets = [0, 128], sizes = [16, 128], strides = [1, 1]} : vector<16x640xf32> to vector<16x128xf32>
    %19 = arith.addf %17, %18 : vector<16x128xf32>
    %20 = vector.extract_strided_slice %16 {offsets = [0, 256], sizes = [16, 128], strides = [1, 1]} : vector<16x640xf32> to vector<16x128xf32>
    %21 = arith.addf %19, %20 : vector<16x128xf32>
    %22 = vector.extract_strided_slice %16 {offsets = [0, 384], sizes = [16, 128], strides = [1, 1]} : vector<16x640xf32> to vector<16x128xf32>
    %23 = arith.addf %21, %22 : vector<16x128xf32>
    %24 = vector.extract_strided_slice %16 {offsets = [0, 512], sizes = [16, 128], strides = [1, 1]} : vector<16x640xf32> to vector<16x128xf32>
    %25 = arith.addf %23, %24 : vector<16x128xf32>
    %cst_14 = arith.constant 0.000000e+00 : f32
    %26 = vector.broadcast %cst_14 : f32 to vector<16x128xf32>
    %27 = arith.maximumf %25, %26 : vector<16x128xf32>
    %28 = arith.truncf %27 : vector<16x128xf32> to vector<16x128xbf16>
    %c0_15 = arith.constant 0 : index
    %c0_16 = arith.constant 0 : index
    %29 = vector.load %arg7[%c0_15, %c0_16] : memref<16x128xbf16, #tpu.memory_space<vmem>>, vector<16x128xbf16>
    tpu.vector_store %arg7[%c0_15, %c0_16], %28 {strides = array<i32>} : memref<16x128xbf16, #tpu.memory_space<vmem>>, vector<16x128xbf16>,
    return
  }
  func.func @transform_0(%arg0: i32) -> (i32, i32) {
    %c0_i32 = arith.constant 0 : i32
    %c0_i32_0 = arith.constant 0 : i32
    return %arg0, %c0_i32 : i32, i32
  }
  func.func @transform_1(%arg0: i32) -> (i32, i32) {
    %c0_i32 = arith.constant 0 : i32
    %c0_i32_0 = arith.constant 0 : i32
    return %arg0, %c0_i32 : i32, i32
  }
  func.func @transform_2(%arg0: i32) -> (i32, i32) {
    %c0_i32 = arith.constant 0 : i32
    %c0_i32_0 = arith.constant 0 : i32
    %c0_i32_1 = arith.constant 0 : i32
    return %c0_i32, %c0_i32_0 : i32, i32
  }
  func.func @transform_3(%arg0: i32) -> (i32, i32) {
    %c0_i32 = arith.constant 0 : i32
    %c0_i32_0 = arith.constant 0 : i32
    %c0_i32_1 = arith.constant 0 : i32
    return %c0_i32, %c0_i32_0 : i32, i32
  }
  func.func @transform_4(%arg0: i32) -> (i32, i32) {
    %c0_i32 = arith.constant 0 : i32
    %c0_i32_0 = arith.constant 0 : i32
    %c0_i32_1 = arith.constant 0 : i32
    return %c0_i32, %c0_i32_0 : i32, i32
  }
  func.func @transform_5(%arg0: i32) -> (i32, i32) {
    %c0_i32 = arith.constant 0 : i32
    %c0_i32_0 = arith.constant 0 : i32
    %c0_i32_1 = arith.constant 0 : i32
    return %c0_i32, %c0_i32_0 : i32, i32
  }
  func.func @transform_6(%arg0: i32) -> (i32, i32) {
    %c0_i32 = arith.constant 0 : i32
    %c0_i32_0 = arith.constant 0 : i32
    return %arg0, %c0_i32 : i32, i32
  }
}

module attributes {stable_mosaic.version = 11 : i64} {
  func.func @mutan_score_kernel(%arg0: i32, %arg1: i32, %arg2: memref<16x128xbf16, #tpu.memory_space<vmem>>, %arg3: memref<128x128xbf16, #tpu.memory_space<vmem>>, %arg4: memref<16x128xbf16, #tpu.memory_space<vmem>>) attributes {dimension_semantics = [#tpu.dimension_semantics<parallel>, #tpu.dimension_semantics<parallel>], iteration_bounds = array<i64: 2, 3>, scalar_prefetch = 0 : i64, scratch_operands = 0 : i64, tpu.core_type = #tpu.core_type<tc>, window_params = [{transform_indices = @transform_0, window_bounds = array<i64: 16, 128>}, {transform_indices = @transform_1, window_bounds = array<i64: 128, 128>}, {transform_indices = @transform_2, window_bounds = array<i64: 16, 128>}]} {
    %c0 = arith.constant 0 : index
    %c0_0 = arith.constant 0 : index
    %0 = vector.load %arg2[%c0, %c0_0] : memref<16x128xbf16, #tpu.memory_space<vmem>>, vector<16x128xbf16>
    %c0_1 = arith.constant 0 : index
    %c0_2 = arith.constant 0 : index
    %1 = vector.load %arg3[%c0_1, %c0_2] : memref<128x128xbf16, #tpu.memory_space<vmem>>, vector<128x128xbf16>
    %cst = arith.constant dense<0.000000e+00> : vector<16x128xf32>
    %2 = tpu.matmul %0, %1, %cst {dimension_numbers = #tpu.dot_dimension_numbers<[1], [0], [0], [1], [0, 0, 1, 1], [], []>} : vector<16x128xbf16>, vector<128x128xbf16>, vector<16x128xf32> -> vector<16x128xf32>
    %cst_3 = arith.constant 5.000000e-01 : f32
    %3 = vector.broadcast %cst_3 : f32 to vector<16x128xf32>
    %4 = arith.mulf %3, %2 : vector<16x128xf32>
    %5 = math.tanh %4 : vector<16x128xf32>
    %cst_4 = arith.constant 1.000000e+00 : f32
    %6 = vector.broadcast %cst_4 : f32 to vector<16x128xf32>
    %7 = arith.addf %5, %6 : vector<16x128xf32>
    %cst_5 = arith.constant 5.000000e-01 : f32
    %8 = vector.broadcast %cst_5 : f32 to vector<16x128xf32>
    %9 = arith.mulf %8, %7 : vector<16x128xf32>
    %10 = arith.truncf %9 : vector<16x128xf32> to vector<16x128xbf16>
    %c0_6 = arith.constant 0 : index
    %c0_7 = arith.constant 0 : index
    %11 = vector.load %arg4[%c0_6, %c0_7] : memref<16x128xbf16, #tpu.memory_space<vmem>>, vector<16x128xbf16>
    tpu.vector_store %arg4[%c0_6, %c0_7], %10 {strides = array<i32>} : memref<16x128xbf16, #tpu.memory_space<vmem>>, vector<16x128xbf16>,
    return
  }
  func.func @transform_0(%arg0: i32, %arg1: i32) -> (i32, i32) {
    %c0_i32 = arith.constant 0 : i32
    %c0_i32_0 = arith.constant 0 : i32
    return %arg0, %c0_i32 : i32, i32
  }
  func.func @transform_1(%arg0: i32, %arg1: i32) -> (i32, i32) {
    %c0_i32 = arith.constant 0 : i32
    %c0_i32_0 = arith.constant 0 : i32
    return %c0_i32, %arg1 : i32, i32
  }
  func.func @transform_2(%arg0: i32, %arg1: i32) -> (i32, i32) {
    %c0_i32 = arith.constant 0 : i32
    return %arg0, %arg1 : i32, i32
  }
}

</mosaic_0001>

<llo_original>
// kernel: mutan_forward.3
$region0: #{mutan_forward.3}
  #allocation0 [shape = 'u32[]', space=smem, size = 0x4, offset = 0x4, fixed_abs, tag = 'smem constant byte address 0x4 - core index']
  #allocation1 [shape = 'u32[144,128]{1,0:T(1,128)}', space=vmem, size = 0x12000, scoped, tag = 'internal scratch']
  %s0 = inlined_call_operand.vmem [shape: bf16[32,128], index: 0, kind: input, shape index: {}]
  %s1 = inlined_call_operand.vmem [shape: bf16[128,384], index: 1, kind: input, shape index: {}]
  %s2 = inlined_call_operand.vmem [shape: bf16[32,384], index: 2, kind: output, shape index: {}]
  %s3 = sld [smem:[#allocation0]]
  $region119: #{mutan_forward.3} parent=0
    _
  %s5 = ssub.s32 1, %s3
  %s6 = scalar_select 0, %s5, %s3
  $region1: #{mutan_forward.3} parent=0
    #allocation2 [shape = 'u8[65536]{0}', space=vmem, size = 0x10000, scoped, tag = 'input window, operand 1']
    #allocation3 [shape = 'u8[8192]{0}', space=vmem, size = 0x2000, scoped, tag = 'output window, operand 0']
    loop: start=0, step=1, limit=8
    $region2: #{mutan_forward.3} parent=1 // loop_pre_header
      _
    $region3: #{mutan_forward.3} parent=1 // loop_header
      %s8 = sphi 0, %s12
      %p9 = scmp.ge.s32.totalorder %s8, 8
      %s15 = sphi 0, %s27
      %s16 = sphi 0, %s23
      %s17 = sphi 0, %s15
      %s18 = sphi 0, %s16
      %s19 = sphi 0, %s17
      %s20 = sphi 0, %s18
      %s30 = sphi 0, %s32
      %s33 = sphi 0, %s30
      %s34 = sphi 0, %s33
      %s50 = sphi 0, %s34
      %s56 = sphi 0, %s58
      %s59 = sphi 0, %s56
      %s60 = sphi 0, %s59
      %s76 = sphi 0, %s60
      %s84 = sphi 0, %s86
      %s87 = sphi 0, %s84
      %s88 = sphi 0, %s87
      %s104 = sphi 0, %s88
    $region4: #{mutan_forward.3} parent=1 // loop_header_branch
      %11 = sbr.rel (%p9) target = $region8
    $region5: #{mutan_forward.3} parent=1 // loop_body
      %s13 = ssub.s32 %s8, 1
      %s14 = ssub.s32 %s8, 2
      %s21 = sadd.s32 1, %s16
      %p22 = scmp.ge.s32.totalorder %s21, 3
      %s23 = scalar_select %p22, 0, %s21
      %s24 = sadd.s32 1, %s15
      %s25 = scalar_select %p22, %s24, %s15
      %p26 = scmp.ge.s32.totalorder %s25, 2
      %s27 = scalar_select %p26, 0, %s25
      %s28 = ssub.s32 %s15, %s27
      %p29 = scmp.eq.s32.totalorder %s28, 0
      %s31 = sadd.s32 %s30, 1
      %s32 = scalar_select %p29, %s30, %s31
      %p35 = pneg %p29
      %p36 = scmp.eq.s32.totalorder %s8, 5
      %p37 = por %p35, %p36
      %p38 = scmp.ne.s32.totalorder %s30, %s33
      %p39 = scmp.eq.s32.totalorder %s8, 0
      %p40 = por %p38, %p39
      %p41 = scmp.ne.s32.totalorder %s30, %s33
      %p42 = scmp.eq.s32.totalorder %s13, 5
      %p43 = por %p41, %p42
      %p44 = scmp.ne.s32.totalorder %s33, %s34
      %p45 = scmp.eq.s32.totalorder %s13, 0
      %p46 = por %p44, %p45
      %p47 = scmp.ne.s32.totalorder %s33, %s34
      %p48 = scmp.eq.s32.totalorder %s14, 5
      %p49 = por %p47, %p48
      %p51 = scmp.ne.s32.totalorder %s34, %s50
      %p52 = scmp.eq.s32.totalorder %s14, 0
      %p53 = por %p51, %p52
      %s54 = ssub.s32 %s16, %s23
      %p55 = scmp.eq.s32.totalorder %s54, 0
      %s57 = sadd.s32 %s56, 1
      %s58 = scalar_select %p55, %s56, %s57
      %p61 = pneg %p55
      %p62 = scmp.eq.s32.totalorder %s8, 5
      %p63 = por %p61, %p62
      %p64 = scmp.ne.s32.totalorder %s56, %s59
      %p65 = scmp.eq.s32.totalorder %s8, 0
      %p66 = por %p64, %p65
      %p67 = scmp.ne.s32.totalorder %s56, %s59
      %p68 = scmp.eq.s32.totalorder %s13, 5
      %p69 = por %p67, %p68
      %p70 = scmp.ne.s32.totalorder %s59, %s60
      %p71 = scmp.eq.s32.totalorder %s13, 0
      %p72 = por %p70, %p71
      %p73 = scmp.ne.s32.totalorder %s59, %s60
      %p74 = scmp.eq.s32.totalorder %s14, 5
      %p75 = por %p73, %p74
      %p77 = scmp.ne.s32.totalorder %s60, %s76
      %p78 = scmp.eq.s32.totalorder %s14, 0
      %p79 = por %p77, %p78
      %s80 = ssub.s32 %s15, %s27
      %s81 = ssub.s32 %s16, %s23
      %s82 = sor.u32 %s80, %s81
      %p83 = scmp.eq.s32.totalorder %s82, 0
      %s85 = sadd.s32 %s84, 1
      %s86 = scalar_select %p83, %s84, %s85
      %p89 = pneg %p83
      %p90 = scmp.eq.s32.totalorder %s8, 5
      %p91 = por %p89, %p90
      %p92 = scmp.ne.s32.totalorder %s84, %s87
      %p93 = scmp.eq.s32.totalorder %s8, 0
      %p94 = por %p92, %p93
      %p95 = scmp.ne.s32.totalorder %s84, %s87
      %p96 = scmp.eq.s32.totalorder %s13, 5
      %p97 = por %p95, %p96
      %p98 = scmp.ne.s32.totalorder %s87, %s88
      %p99 = scmp.eq.s32.totalorder %s13, 0
      %p100 = por %p98, %p99
      %p101 = scmp.ne.s32.totalorder %s87, %s88
      %p102 = scmp.eq.s32.totalorder %s14, 5
      %p103 = por %p101, %p102
      %p105 = scmp.ne.s32.totalorder %s88, %s104
      %p106 = scmp.eq.s32.totalorder %s14, 0
      %p107 = por %p105, %p106
      %p108 = scmp.le.s32.totalorder 1, %s8
      %p109 = scmp.lt.s32.totalorder %s8, 7
      %p110 = pnand %p108, %p109
      %p111 = pneg %p110
      // Predicated region
      $region9: #{mutan_forward.3} parent=5 // pred_check
        _
      $region10: #{mutan_forward.3} parent=5 // pred_check_branch
        %113 = sbr.rel (%p110) target = $region12
      $region11: #{mutan_forward.3} parent=5 // pred_region
        %s114 = ssub.s32 %s8, 1
      $region12: #{mutan_forward.3} parent=5 // pred_fallthru
        _
      %p115 = scmp.lt.s32.totalorder %s8, 6
      // Predicated region
      $region13: #{mutan_forward.3} parent=5 // pred_check
        %p116 = pneg %p115
      $region14: #{mutan_forward.3} parent=5 // pred_check_branch
        %118 = sbr.rel (%p116) target = $region16
      $region15: #{mutan_forward.3} parent=5 // pred_region
        // Predicated region
        $region17: #{mutan_forward.3} parent=15 // pred_check
          %p119 = pneg %p40
        $region18: #{mutan_forward.3} parent=15 // pred_check_branch
          %121 = sbr.rel (%p119) target = $region20
        $region19: #{mutan_forward.3} parent=15 // pred_region
          %s122 = smul.u32 2, %s15
          %p123 = scmp.lt.s32.totalorder %s122, 3
          %s124 = scalar_select %p123, %s122, 3
          %s125 = smul.addr %s124, 4
          %s126 = scalar_lea.vmem %s0, %s125
          %s127 = smul.u32 2, %s15
        $region20: #{mutan_forward.3} parent=15 // pred_fallthru
          _
        // Predicated region
        $region21: #{mutan_forward.3} parent=15 // pred_check
          %p128 = pneg %p66
        $region22: #{mutan_forward.3} parent=15 // pred_check_branch
          %130 = sbr.rel (%p128) target = $region24
        $region23: #{mutan_forward.3} parent=15 // pred_region
          %s131 = sand.u32 %s56, 1
          %s132 = sand.u32 %s56, 1
          %s133 = smul.addr %s132, 64
          %s134 = scalar_lea.vmem [#allocation2], %s133
          %s135 = smul.addr %s16, 4
          %s136 = scalar_lea.vmem %s1, %s135
          // Predicated region
          $region25: #{mutan_forward.3} parent=23 // pred_check
            _
          $region26: #{mutan_forward.3} parent=23 // pred_check_branch
            %138 = sbr.rel (0) target = $region28
          $region27: #{mutan_forward.3} parent=23 // pred_region
            // Predicated region
            $region29: #{mutan_forward.3} parent=27 // pred_check
              _
            $region30: #{mutan_forward.3} parent=27 // pred_check_branch
              %140 = sbr.rel target = $region32
            $region31: #{mutan_forward.3} parent=27 // pred_region
              // Predicated region
              $region44: #{mutan_forward.3} parent=31 // pred_check
                _
              $region45: #{mutan_forward.3} parent=31 // pred_check_branch
                %185 = sbr.rel (0) target = $region47
              $region46: #{mutan_forward.3} parent=31 // pred_region
                loop: start=0, step=1, limit=1
                $region48: #{mutan_forward.3} parent=46 // loop_pre_header
                  _
                $region49: #{mutan_forward.3} parent=46 // loop_header
                  %s187 = sphi 0, %s191
                  %p188 = scmp.ge.s32.totalorder %s187, 1
                  %s192 = sphi %s136, %s136
                  %s193 = sphi %s134, %s134
                $region50: #{mutan_forward.3} parent=46 // loop_header_branch
                  %190 = sbr.rel (%p188) target = $region54
                $region51: #{mutan_forward.3} parent=46 // loop_body
                  _
                $region52: #{mutan_forward.3} parent=46 // loop_footer
                  %s191 = sadd.s32 1, %s187
                $region53: #{mutan_forward.3} parent=46 // loop_footer_branch
                  %186 = sbr.rel target = $region49
                $region54: #{mutan_forward.3} parent=46 // loop_exit
                  _
                loop: start=0, step=1, limit=1
                $region55: #{mutan_forward.3} parent=46 // loop_pre_header
                  _
                $region56: #{mutan_forward.3} parent=46 // loop_header
                  %s196 = sphi 0, %s200
                  %p197 = scmp.ge.s32.totalorder %s196, 1
                  %s201 = sphi %s136, %s136
                  %s202 = sphi %s134, %s134
                $region57: #{mutan_forward.3} parent=46 // loop_header_branch
                  %199 = sbr.rel (%p197) target = $region61
                $region58: #{mutan_forward.3} parent=46 // loop_body
                  %v203 = vld [vmem:[%s201] sm:$0xf]
                  %204 = vst [vmem:[%s202] sm:$0xf] %v203
                  %v205 = vld [vmem:[%s201 + $0xc] sm:$0xf]
                  %206 = vst [vmem:[%s202 + $0x4] sm:$0xf] %v205
                  %v207 = vld [vmem:[%s201 + $0x18] sm:$0xf]
                  %208 = vst [vmem:[%s202 + $0x8] sm:$0xf] %v207
                  %v209 = vld [vmem:[%s201 + $0x24] sm:$0xf]
                  %210 = vst [vmem:[%s202 + $0xc] sm:$0xf] %v209
                  %v211 = vld [vmem:[%s201 + $0x30] sm:$0xf]
                  %212 = vst [vmem:[%s202 + $0x10] sm:$0xf] %v211
                  %v213 = vld [vmem:[%s201 + $0x3c] sm:$0xf]
                  %214 = vst [vmem:[%s202 + $0x14] sm:$0xf] %v213
                  %v215 = vld [vmem:[%s201 + $0x48] sm:$0xf]
                  %216 = vst [vmem:[%s202 + $0x18] sm:$0xf] %v215
                  %v217 = vld [vmem:[%s201 + $0x54] sm:$0xf]
                  %218 = vst [vmem:[%s202 + $0x1c] sm:$0xf] %v217
                  %v219 = vld [vmem:[%s201 + $0x60] sm:$0xf]
                  %220 = vst [vmem:[%s202 + $0x20] sm:$0xf] %v219
                  %v221 = vld [vmem:[%s201 + $0x6c] sm:$0xf]
                  %222 = vst [vmem:[%s202 + $0x24] sm:$0xf] %v221
                  %v223 = vld [vmem:[%s201 + $0x78] sm:$0xf]
                  %224 = vst [vmem:[%s202 + $0x28] sm:$0xf] %v223
                  %v225 = vld [vmem:[%s201 + $0x84] sm:$0xf]
                  %226 = vst [vmem:[%s202 + $0x2c] sm:$0xf] %v225
                  %v227 = vld [vmem:[%s201 + $0x90] sm:$0xf]
                  %228 = vst [vmem:[%s202 + $0x30] sm:$0xf] %v227
                  %v229 = vld [vmem:[%s201 + $0x9c] sm:$0xf]
                  %230 = vst [vmem:[%s202 + $0x34] sm:$0xf] %v229
                  %v231 = vld [vmem:[%s201 + $0xa8] sm:$0xf]
                  %232 = vst [vmem:[%s202 + $0x38] sm:$0xf] %v231
                  %v233 = vld [vmem:[%s201 + $0xb4] sm:$0xf]
                  %234 = vst [vmem:[%s202 + $0x3c] sm:$0xf] %v233
                $region59: #{mutan_forward.3} parent=46 // loop_footer
                  %s200 = sadd.s32 1, %s196
                $region60: #{mutan_forward.3} parent=46 // loop_footer_branch
                  %195 = sbr.rel target = $region56
                $region61: #{mutan_forward.3} parent=46 // loop_exit
                  _
              $region47: #{mutan_forward.3} parent=31 // pred_fallthru
                _
            $region32: #{mutan_forward.3} parent=27 // pred_fallthru
              _
            // Predicated region
            $region33: #{mutan_forward.3} parent=27 // pred_check
              _
            $region34: #{mutan_forward.3} parent=27 // pred_check_branch
              %142 = sbr.rel (0) target = $region36
            $region35: #{mutan_forward.3} parent=27 // pred_region
              loop: start=0, step=1, limit=1
              $region37: #{mutan_forward.3} parent=35 // loop_pre_header
                _
              $region38: #{mutan_forward.3} parent=35 // loop_header
                %s145 = sphi 0, %s149
                %p146 = scmp.ge.s32.totalorder %s145, 1
                %s150 = sphi %s136, %s136
                %s151 = sphi %s134, %s134
              $region39: #{mutan_forward.3} parent=35 // loop_header_branch
                %148 = sbr.rel (%p146) target = $region43
              $region40: #{mutan_forward.3} parent=35 // loop_body
                %v152 = vld [vmem:[%s150] sm:$0xf]
                %153 = vst [vmem:[%s151] sm:$0xf] %v152
                %v154 = vld [vmem:[%s150 + $0xc] sm:$0xf]
                %155 = vst [vmem:[%s151 + $0x4] sm:$0xf] %v154
                %v156 = vld [vmem:[%s150 + $0x18] sm:$0xf]
                %157 = vst [vmem:[%s151 + $0x8] sm:$0xf] %v156
                %v158 = vld [vmem:[%s150 + $0x24] sm:$0xf]
                %159 = vst [vmem:[%s151 + $0xc] sm:$0xf] %v158
                %v160 = vld [vmem:[%s150 + $0x30] sm:$0xf]
                %161 = vst [vmem:[%s151 + $0x10] sm:$0xf] %v160
                %v162 = vld [vmem:[%s150 + $0x3c] sm:$0xf]
                %163 = vst [vmem:[%s151 + $0x14] sm:$0xf] %v162
                %v164 = vld [vmem:[%s150 + $0x48] sm:$0xf]
                %165 = vst [vmem:[%s151 + $0x18] sm:$0xf] %v164
                %v166 = vld [vmem:[%s150 + $0x54] sm:$0xf]
                %167 = vst [vmem:[%s151 + $0x1c] sm:$0xf] %v166
                %v168 = vld [vmem:[%s150 + $0x60] sm:$0xf]
                %169 = vst [vmem:[%s151 + $0x20] sm:$0xf] %v168
                %v170 = vld [vmem:[%s150 + $0x6c] sm:$0xf]
                %171 = vst [vmem:[%s151 + $0x24] sm:$0xf] %v170
                %v172 = vld [vmem:[%s150 + $0x78] sm:$0xf]
                %173 = vst [vmem:[%s151 + $0x28] sm:$0xf] %v172
                %v174 = vld [vmem:[%s150 + $0x84] sm:$0xf]
                %175 = vst [vmem:[%s151 + $0x2c] sm:$0xf] %v174
                %v176 = vld [vmem:[%s150 + $0x90] sm:$0xf]
                %177 = vst [vmem:[%s151 + $0x30] sm:$0xf] %v176
                %v178 = vld [vmem:[%s150 + $0x9c] sm:$0xf]
                %179 = vst [vmem:[%s151 + $0x34] sm:$0xf] %v178
                %v180 = vld [vmem:[%s150 + $0xa8] sm:$0xf]
                %181 = vst [vmem:[%s151 + $0x38] sm:$0xf] %v180
                %v182 = vld [vmem:[%s150 + $0xb4] sm:$0xf]
                %183 = vst [vmem:[%s151 + $0x3c] sm:$0xf] %v182
              $region41: #{mutan_forward.3} parent=35 // loop_footer
                %s149 = sadd.s32 1, %s145
              $region42: #{mutan_forward.3} parent=35 // loop_footer_branch
                %144 = sbr.rel target = $region38
              $region43: #{mutan_forward.3} parent=35 // loop_exit
                _
            $region36: #{mutan_forward.3} parent=27 // pred_fallthru
              _
          $region28: #{mutan_forward.3} parent=23 // pred_fallthru
            _
          %235 = vnop
        $region24: #{mutan_forward.3} parent=15 // pred_fallthru
          _
      $region16: #{mutan_forward.3} parent=5 // pred_fallthru
        _
      %p236 = scmp.le.s32.totalorder 1, %s8
      %p237 = scmp.lt.s32.totalorder %s8, 7
      %p238 = pnand %p236, %p237
      %p239 = pneg %p238
      // Predicated region
      $region62: #{mutan_forward.3} parent=5 // pred_check
        _
      $region63: #{mutan_forward.3} parent=5 // pred_check_branch
        %241 = sbr.rel (%p238) target = $region65
      $region64: #{mutan_forward.3} parent=5 // pred_region
        %s242 = ssub.s32 %s8, 1
        %s243 = sand.u32 %s59, 1
        %s244 = sand.u32 %s59, 1
        %s245 = smul.addr %s244, 64
        %s246 = scalar_lea.vmem [#allocation2], %s245
        // Predicated region
        $region66: #{mutan_forward.3} parent=64 // pred_check
          %p247 = pneg %p72
        $region67: #{mutan_forward.3} parent=64 // pred_check_branch
          %249 = sbr.rel (%p247) target = $region69
        $region68: #{mutan_forward.3} parent=64 // pred_region
          _
        $region69: #{mutan_forward.3} parent=64 // pred_fallthru
          _
        %s250 = smul.u32 2, %s17
        %p251 = scmp.lt.s32.totalorder %s250, 3
        %s252 = scalar_select %p251, %s250, 3
        %s253 = smul.addr %s252, 4
        %s254 = scalar_lea.vmem %s0, %s253
        %p255 = pneg %p46
        %p256 = pneg %p43
        %s257 = sand.u32 %s59, 1
        %s258 = sand.u32 %s59, 1
        %s259 = smul.addr %s258, 64
        %s260 = scalar_lea.vmem [#allocation2], %s259
        %p261 = pneg %p72
        %p262 = pneg %p69
        %p263 = pneg %p100
        %p264 = pneg %p97
        %s265 = sand.u32 %s87, 1
        %s266 = sand.u32 %s87, 1
        %s267 = smul.addr %s266, 8
        %s268 = scalar_lea.vmem [#allocation3], %s267
        %s269 = smul.u32 2, %s17
        %p270 = scmp.lt.s32.totalorder %s269, 3
        %s271 = scalar_select %p270, %s269, 3
        %s272 = smul.addr %s271, 4
        %s273 = scalar_lea.vmem %s0, %s272
        %s274 = smul.u32 2, %s17
        %s275 = smul.u32 2, %s17
        %v277 = vld [vmem:[%s273] sm:$0xf]
        %v278 = vld [vmem:[%s273 + $0x4] sm:$0xf]
        %v279 = vld [vmem:[%s246] sm:$0xf]
        %v280 = vld [vmem:[%s246 + $0x4] sm:$0xf]
        %v281 = vld [vmem:[%s246 + $0x8] sm:$0xf]
        %v282 = vld [vmem:[%s246 + $0xc] sm:$0xf]
        %v283 = vld [vmem:[%s246 + $0x10] sm:$0xf]
        %v284 = vld [vmem:[%s246 + $0x14] sm:$0xf]
        %v285 = vld [vmem:[%s246 + $0x18] sm:$0xf]
        %v286 = vld [vmem:[%s246 + $0x1c] sm:$0xf]
        %v287 = vld [vmem:[%s246 + $0x20] sm:$0xf]
        %v288 = vld [vmem:[%s246 + $0x24] sm:$0xf]
        %v289 = vld [vmem:[%s246 + $0x28] sm:$0xf]
        %v290 = vld [vmem:[%s246 + $0x2c] sm:$0xf]
        %v291 = vld [vmem:[%s246 + $0x30] sm:$0xf]
        %v292 = vld [vmem:[%s246 + $0x34] sm:$0xf]
        %v293 = vld [vmem:[%s246 + $0x38] sm:$0xf]
        %v294 = vld [vmem:[%s246 + $0x3c] sm:$0xf]
        %v297 = vunpack.c.l.b16 %v277
        %v298 = vunpack.c.l.b16 %v278
        %v299 = vpack.c.b16 %v298, %v297
        %v317 = vunpack.c.l.b16 %v279
        %v318 = vunpack.c.l.b16 %v280
        %v319 = vunpack.c.l.b16 %v281
        %v320 = vunpack.c.l.b16 %v282
        %v321 = vunpack.c.l.b16 %v283
        %v322 = vunpack.c.l.b16 %v284
        %v323 = vunpack.c.l.b16 %v285
        %v324 = vunpack.c.l.b16 %v286
        %v325 = vunpack.c.l.b16 %v287
        %v326 = vunpack.c.l.b16 %v288
        %v327 = vunpack.c.l.b16 %v289
        %v328 = vunpack.c.l.b16 %v290
        %v329 = vunpack.c.l.b16 %v291
        %v330 = vunpack.c.l.b16 %v292
        %v331 = vunpack.c.l.b16 %v293
        %v332 = vunpack.c.l.b16 %v294
        %v333 = vpack.c.b16 %v318, %v317
        %v334 = vpack.c.b16 %v320, %v319
        %v335 = vpack.c.b16 %v322, %v321
        %v336 = vpack.c.b16 %v324, %v323
        %v337 = vpack.c.b16 %v326, %v325
        %v338 = vpack.c.b16 %v328, %v327
        %v339 = vpack.c.b16 %v330, %v329
        %v340 = vpack.c.b16 %v332, %v331
        %349 = vmatprep.subr.bf16.mxu0 0
        %350 = vmatpush1.bf16.msra.mxu0 %v333
        %351 = vmatprep.subr.bf16.mxu0 0
        %352 = vmatpush1.bf16.msra.mxu0 %v334
        %353 = vmatprep.subr.bf16.mxu0 0
        %354 = vmatpush1.bf16.msra.mxu0 %v335
        %355 = vmatprep.subr.bf16.mxu0 0
        %356 = vmatpush1.bf16.msra.mxu0 %v336
        %357 = vmatprep.subr.bf16.mxu0 0
        %358 = vmatpush1.bf16.msra.mxu0 %v337
        %359 = vmatprep.subr.bf16.mxu0 0
        %360 = vmatpush1.bf16.msra.mxu0 %v338
        %361 = vmatprep.subr.bf16.mxu0 0
        %362 = vmatpush1.bf16.msra.mxu0 %v339
        %363 = vmatprep.subr.bf16.mxu0 0
        %364 = vmatpush1.bf16.msra.mxu0 %v340
        %365 = vmatprep.subr.bf16.mxu0 0
        %366 = vmatpush1.bf16.msra.mxu0 0
        %367 = vmatprep.subr.bf16.mxu0 0
        %368 = vmatpush1.bf16.msra.mxu0 0
        %369 = vmatprep.subr.bf16.mxu0 0
        %370 = vmatpush1.bf16.msra.mxu0 0
        %371 = vmatprep.subr.bf16.mxu0 0
        %372 = vmatpush1.bf16.msra.mxu0 0
        %373 = vmatprep.subr.bf16.mxu0 0
        %374 = vmatpush1.bf16.msra.mxu0 0
        %375 = vmatprep.subr.bf16.mxu0 0
        %376 = vmatpush1.bf16.msra.mxu0 0
        %377 = vmatprep.subr.bf16.mxu0 0
        %378 = vmatpush1.bf16.msra.mxu0 0
        %379 = vmatprep.subr.bf16.mxu0 0
        %380 = vmatpush1.bf16.msra.mxu0 0
        %381 = vmatprep.mubr.bf16.mxu0 0
        %382 = vmatmul.mubr.bf16.gmra.mrb[0].mxu0 %v299
        %v383 = vpop.f32.mrb[0].mxu0
        %v384 = vadd.f32 0.0, %v383
        %v385 = vpop.f32.mrb[0].mxu0
        %v386 = vpop.f32.mrb[0].mxu0
        %v387 = vadd.f32 0.0, %v386
        %v388 = vpop.f32.mrb[0].mxu0
        %389 = vdwg.mxu0
        %v390 = vmul.f32 %v384, 0.5
        %v391 = vmul.f32 %v387, 0.5
        %v392 = vtanh.pop %v390
        %v393 = vtanh.pop %v391
        %v394 = vadd.f32 %v392, 1.0
        %v395 = vadd.f32 %v393, 1.0
        %v396 = vmul.f32 %v394, 0.5
        %v397 = vmul.f32 %v395, 0.5
        %v398 = vpack.c.bf16 %v397, %v396
        %v400 = vunpack.c.l.b16 %v398
        %v401 = vunpack.c.h.b16 %v398
        %v402 = vpack.c.b16 %v400, %v400
        %v403 = vpack.c.b16 %v401, %v401
        %406 = vst [vmem:[%s268] sm:$0xf] %v402
        %407 = vst [vmem:[%s268 + $0x4] sm:$0xf] %v403
        %s408 = sand.u32 %s87, 1
        %s409 = sand.u32 %s87, 1
        %s410 = smul.addr %s409, 8
        %s411 = scalar_lea.vmem [#allocation3], %s410
        // Predicated region
        $region70: #{mutan_forward.3} parent=64 // pred_check
          %p412 = pneg %p97
        $region71: #{mutan_forward.3} parent=64 // pred_check_branch
          %414 = sbr.rel (%p412) target = $region73
        $region72: #{mutan_forward.3} parent=64 // pred_region
          %s415 = smul.u32 2, %s17
          %s416 = smul.addr %s415, 3
          %s417 = sadd.s32 %s18, %s416
          %s418 = smul.addr %s417, 4
          %s419 = scalar_lea.vmem %s2, %s418
          // Predicated region
          $region74: #{mutan_forward.3} parent=72 // pred_check
            _
          $region75: #{mutan_forward.3} parent=72 // pred_check_branch
            %421 = sbr.rel (0) target = $region77
          $region76: #{mutan_forward.3} parent=72 // pred_region
            // Predicated region
            $region78: #{mutan_forward.3} parent=76 // pred_check
              _
            $region79: #{mutan_forward.3} parent=76 // pred_check_branch
              %423 = sbr.rel target = $region81
            $region80: #{mutan_forward.3} parent=76 // pred_region
              // Predicated region
              $region93: #{mutan_forward.3} parent=80 // pred_check
                _
              $region94: #{mutan_forward.3} parent=80 // pred_check_branch
                %440 = sbr.rel (0) target = $region96
              $region95: #{mutan_forward.3} parent=80 // pred_region
                loop: start=0, step=1, limit=1
                $region97: #{mutan_forward.3} parent=95 // loop_pre_header
                  _
                $region98: #{mutan_forward.3} parent=95 // loop_header
                  %s442 = sphi 0, %s446
                  %p443 = scmp.ge.s32.totalorder %s442, 1
                  %s447 = sphi %s411, %s411
                  %s448 = sphi %s419, %s419
                $region99: #{mutan_forward.3} parent=95 // loop_header_branch
                  %445 = sbr.rel (%p443) target = $region103
                $region100: #{mutan_forward.3} parent=95 // loop_body
                  _
                $region101: #{mutan_forward.3} parent=95 // loop_footer
                  %s446 = sadd.s32 1, %s442
                $region102: #{mutan_forward.3} parent=95 // loop_footer_branch
                  %441 = sbr.rel target = $region98
                $region103: #{mutan_forward.3} parent=95 // loop_exit
                  _
                loop: start=0, step=1, limit=1
                $region104: #{mutan_forward.3} parent=95 // loop_pre_header
                  _
                $region105: #{mutan_forward.3} parent=95 // loop_header
                  %s451 = sphi 0, %s455
                  %p452 = scmp.ge.s32.totalorder %s451, 1
                  %s456 = sphi %s411, %s411
                  %s457 = sphi %s419, %s419
                $region106: #{mutan_forward.3} parent=95 // loop_header_branch
                  %454 = sbr.rel (%p452) target = $region110
                $region107: #{mutan_forward.3} parent=95 // loop_body
                  %v458 = vld [vmem:[%s456] sm:$0xf]
                  %459 = vst [vmem:[%s457] sm:$0xf] %v458
                  %v460 = vld [vmem:[%s456 + $0x4] sm:$0xf]
                  %461 = vst [vmem:[%s457 + $0xc] sm:$0xf] %v460
                $region108: #{mutan_forward.3} parent=95 // loop_footer
                  %s455 = sadd.s32 1, %s451
                $region109: #{mutan_forward.3} parent=95 // loop_footer_branch
                  %450 = sbr.rel target = $region105
                $region110: #{mutan_forward.3} parent=95 // loop_exit
                  _
              $region96: #{mutan_forward.3} parent=80 // pred_fallthru
                _
            $region81: #{mutan_forward.3} parent=76 // pred_fallthru
              _
            // Predicated region
            $region82: #{mutan_forward.3} parent=76 // pred_check
              _
            $region83: #{mutan_forward.3} parent=76 // pred_check_branch
              %425 = sbr.rel (0) target = $region85
            $region84: #{mutan_forward.3} parent=76 // pred_region
              loop: start=0, step=1, limit=1
              $region86: #{mutan_forward.3} parent=84 // loop_pre_header
                _
              $region87: #{mutan_forward.3} parent=84 // loop_header
                %s428 = sphi 0, %s432
                %p429 = scmp.ge.s32.totalorder %s428, 1
                %s433 = sphi %s411, %s411
                %s434 = sphi %s419, %s419
              $region88: #{mutan_forward.3} parent=84 // loop_header_branch
                %431 = sbr.rel (%p429) target = $region92
              $region89: #{mutan_forward.3} parent=84 // loop_body
                %v435 = vld [vmem:[%s433] sm:$0xf]
                %436 = vst [vmem:[%s434] sm:$0xf] %v435
                %v437 = vld [vmem:[%s433 + $0x4] sm:$0xf]
                %438 = vst [vmem:[%s434 + $0xc] sm:$0xf] %v437
              $region90: #{mutan_forward.3} parent=84 // loop_footer
                %s432 = sadd.s32 1, %s428
              $region91: #{mutan_forward.3} parent=84 // loop_footer_branch
                %427 = sbr.rel target = $region87
              $region92: #{mutan_forward.3} parent=84 // loop_exit
                _
            $region85: #{mutan_forward.3} parent=76 // pred_fallthru
              _
          $region77: #{mutan_forward.3} parent=72 // pred_fallthru
            _
          %462 = vnop
        $region73: #{mutan_forward.3} parent=64 // pred_fallthru
          _
      $region65: #{mutan_forward.3} parent=5 // pred_fallthru
        _
      %p463 = scmp.le.s32.totalorder 2, %s8
      // Predicated region
      $region111: #{mutan_forward.3} parent=5 // pred_check
        %p464 = pneg %p463
      $region112: #{mutan_forward.3} parent=5 // pred_check_branch
        %466 = sbr.rel (%p464) target = $region114
      $region113: #{mutan_forward.3} parent=5 // pred_region
        %s467 = ssub.s32 %s8, 2
        // Predicated region
        $region115: #{mutan_forward.3} parent=113 // pred_check
          %p468 = pneg %p103
        $region116: #{mutan_forward.3} parent=113 // pred_check_branch
          %470 = sbr.rel (%p468) target = $region118
        $region117: #{mutan_forward.3} parent=113 // pred_region
          %s471 = sand.u32 %s88, 1
          %s472 = sand.u32 %s88, 1
          %s473 = smul.addr %s472, 8
          %s474 = scalar_lea.vmem [#allocation3], %s473
        $region118: #{mutan_forward.3} parent=113 // pred_fallthru
          _
      $region114: #{mutan_forward.3} parent=5 // pred_fallthru
        _
    $region6: #{mutan_forward.3} parent=1 // loop_footer
      %s12 = sadd.s32 1, %s8
    $region7: #{mutan_forward.3} parent=1 // loop_footer_branch
      %7 = sbr.rel target = $region3
    $region8: #{mutan_forward.3} parent=1 // loop_exit
      _

// kernel: mutan_forward.2
$region0: #{mutan_forward.2}
  #allocation0 [shape = 'u32[]', space=smem, size = 0x4, offset = 0x4, fixed_abs, tag = 'smem constant byte address 0x4 - core index']
  #allocation1 [shape = 'u32[144,128]{1,0:T(1,128)}', space=vmem, size = 0x12000, scoped, tag = 'internal scratch']
  %s0 = inlined_call_operand.vmem [shape: bf16[32,128], index: 0, kind: input, shape index: {}]
  %s1 = inlined_call_operand.vmem [shape: bf16[32,128], index: 1, kind: input, shape index: {}]
  %s2 = inlined_call_operand.vmem [shape: bf16[128,640], index: 2, kind: input, shape index: {}]
  %s3 = inlined_call_operand.vmem [shape: f32[1,640], index: 3, kind: input, shape index: {}]
  %s4 = inlined_call_operand.vmem [shape: bf16[128,640], index: 4, kind: input, shape index: {}]
  %s5 = inlined_call_operand.vmem [shape: f32[1,640], index: 5, kind: input, shape index: {}]
  %s6 = inlined_call_operand.vmem [shape: bf16[32,128], index: 6, kind: output, shape index: {}]
  %s7 = sld [smem:[#allocation0]]
  $region57: #{mutan_forward.2} parent=0
    _
  %s9 = ssub.s32 1, %s7
  %s10 = scalar_select 0, %s9, %s7
  loop: start=0, step=1, limit=4
  $region2: #{mutan_forward.2} parent=0 // loop_pre_header
    _
  $region3: #{mutan_forward.2} parent=0 // loop_header
    %s12 = sphi 0, %s16
    %p13 = scmp.ge.s32.totalorder %s12, 4
    %s22 = sphi 0, %s24
    %s25 = sphi 0, %s22
    %s26 = sphi 0, %s25
    %s42 = sphi 0, %s26
    %s48 = sphi 0, %s50
    %s51 = sphi 0, %s48
    %s52 = sphi 0, %s51
    %s68 = sphi 0, %s52
    %s72 = sphi 0, %s72
    %s74 = sphi 0, %s72
    %s75 = sphi 0, %s74
    %s89 = sphi 0, %s75
    %s93 = sphi 0, %s93
    %s95 = sphi 0, %s93
    %s96 = sphi 0, %s95
    %s110 = sphi 0, %s96
    %s114 = sphi 0, %s114
    %s116 = sphi 0, %s114
    %s117 = sphi 0, %s116
    %s131 = sphi 0, %s117
    %s135 = sphi 0, %s135
    %s137 = sphi 0, %s135
    %s138 = sphi 0, %s137
    %s152 = sphi 0, %s138
    %s158 = sphi 0, %s160
    %s161 = sphi 0, %s158
    %s162 = sphi 0, %s161
    %s178 = sphi 0, %s162
  $region4: #{mutan_forward.2} parent=0 // loop_header_branch
    %15 = sbr.rel (%p13) target = $region8
  $region5: #{mutan_forward.2} parent=0 // loop_body
    %s17 = ssub.s32 %s12, 1
    %s18 = ssub.s32 %s12, 2
    %s19 = sadd.s32 %s12, 1
    %s20 = ssub.s32 %s12, %s19
    %p21 = scmp.eq.s32.totalorder %s20, 0
    %s23 = sadd.s32 %s22, 1
    %s24 = scalar_select %p21, %s22, %s23
    %p27 = pneg %p21
    %p28 = scmp.eq.s32.totalorder %s12, 1
    %p29 = por %p27, %p28
    %p30 = scmp.ne.s32.totalorder %s22, %s25
    %p31 = scmp.eq.s32.totalorder %s12, 0
    %p32 = por %p30, %p31
    %p33 = scmp.ne.s32.totalorder %s22, %s25
    %p34 = scmp.eq.s32.totalorder %s17, 1
    %p35 = por %p33, %p34
    %p36 = scmp.ne.s32.totalorder %s25, %s26
    %p37 = scmp.eq.s32.totalorder %s17, 0
    %p38 = por %p36, %p37
    %p39 = scmp.ne.s32.totalorder %s25, %s26
    %p40 = scmp.eq.s32.totalorder %s18, 1
    %p41 = por %p39, %p40
    %p43 = scmp.ne.s32.totalorder %s26, %s42
    %p44 = scmp.eq.s32.totalorder %s18, 0
    %p45 = por %p43, %p44
    %s46 = ssub.s32 %s12, %s19
    %p47 = scmp.eq.s32.totalorder %s46, 0
    %s49 = sadd.s32 %s48, 1
    %s50 = scalar_select %p47, %s48, %s49
    %p53 = pneg %p47
    %p54 = scmp.eq.s32.totalorder %s12, 1
    %p55 = por %p53, %p54
    %p56 = scmp.ne.s32.totalorder %s48, %s51
    %p57 = scmp.eq.s32.totalorder %s12, 0
    %p58 = por %p56, %p57
    %p59 = scmp.ne.s32.totalorder %s48, %s51
    %p60 = scmp.eq.s32.totalorder %s17, 1
    %p61 = por %p59, %p60
    %p62 = scmp.ne.s32.totalorder %s51, %s52
    %p63 = scmp.eq.s32.totalorder %s17, 0
    %p64 = por %p62, %p63
    %p65 = scmp.ne.s32.totalorder %s51, %s52
    %p66 = scmp.eq.s32.totalorder %s18, 1
    %p67 = por %p65, %p66
    %p69 = scmp.ne.s32.totalorder %s52, %s68
    %p70 = scmp.eq.s32.totalorder %s18, 0
    %p71 = por %p69, %p70
    %s73 = sadd.s32 %s72, 1
    %p76 = scmp.eq.s32.totalorder %s12, 1
    %p77 = scmp.ne.s32.totalorder %s72, %s74
    %p78 = scmp.eq.s32.totalorder %s12, 0
    %p79 = por %p77, %p78
    %p80 = scmp.ne.s32.totalorder %s72, %s74
    %p81 = scmp.eq.s32.totalorder %s17, 1
    %p82 = por %p80, %p81
    %p83 = scmp.ne.s32.totalorder %s74, %s75
    %p84 = scmp.eq.s32.totalorder %s17, 0
    %p85 = por %p83, %p84
    %p86 = scmp.ne.s32.totalorder %s74, %s75
    %p87 = scmp.eq.s32.totalorder %s18, 1
    %p88 = por %p86, %p87
    %p90 = scmp.ne.s32.totalorder %s75, %s89
    %p91 = scmp.eq.s32.totalorder %s18, 0
    %p92 = por %p90, %p91
    %s94 = sadd.s32 %s93, 1
    %p97 = scmp.eq.s32.totalorder %s12, 1
    %p98 = scmp.ne.s32.totalorder %s93, %s95
    %p99 = scmp.eq.s32.totalorder %s12, 0
    %p100 = por %p98, %p99
    %p101 = scmp.ne.s32.totalorder %s93, %s95
    %p102 = scmp.eq.s32.totalorder %s17, 1
    %p103 = por %p101, %p102
    %p104 = scmp.ne.s32.totalorder %s95, %s96
    %p105 = scmp.eq.s32.totalorder %s17, 0
    %p106 = por %p104, %p105
    %p107 = scmp.ne.s32.totalorder %s95, %s96
    %p108 = scmp.eq.s32.totalorder %s18, 1
    %p109 = por %p107, %p108
    %p111 = scmp.ne.s32.totalorder %s96, %s110
    %p112 = scmp.eq.s32.totalorder %s18, 0
    %p113 = por %p111, %p112
    %s115 = sadd.s32 %s114, 1
    %p118 = scmp.eq.s32.totalorder %s12, 1
    %p119 = scmp.ne.s32.totalorder %s114, %s116
    %p120 = scmp.eq.s32.totalorder %s12, 0
    %p121 = por %p119, %p120
    %p122 = scmp.ne.s32.totalorder %s114, %s116
    %p123 = scmp.eq.s32.totalorder %s17, 1
    %p124 = por %p122, %p123
    %p125 = scmp.ne.s32.totalorder %s116, %s117
    %p126 = scmp.eq.s32.totalorder %s17, 0
    %p127 = por %p125, %p126
    %p128 = scmp.ne.s32.totalorder %s116, %s117
    %p129 = scmp.eq.s32.totalorder %s18, 1
    %p130 = por %p128, %p129
    %p132 = scmp.ne.s32.totalorder %s117, %s131
    %p133 = scmp.eq.s32.totalorder %s18, 0
    %p134 = por %p132, %p133
    %s136 = sadd.s32 %s135, 1
    %p139 = scmp.eq.s32.totalorder %s12, 1
    %p140 = scmp.ne.s32.totalorder %s135, %s137
    %p141 = scmp.eq.s32.totalorder %s12, 0
    %p142 = por %p140, %p141
    %p143 = scmp.ne.s32.totalorder %s135, %s137
    %p144 = scmp.eq.s32.totalorder %s17, 1
    %p145 = por %p143, %p144
    %p146 = scmp.ne.s32.totalorder %s137, %s138
    %p147 = scmp.eq.s32.totalorder %s17, 0
    %p148 = por %p146, %p147
    %p149 = scmp.ne.s32.totalorder %s137, %s138
    %p150 = scmp.eq.s32.totalorder %s18, 1
    %p151 = por %p149, %p150
    %p153 = scmp.ne.s32.totalorder %s138, %s152
    %p154 = scmp.eq.s32.totalorder %s18, 0
    %p155 = por %p153, %p154
    %s156 = ssub.s32 %s12, %s19
    %p157 = scmp.eq.s32.totalorder %s156, 0
    %s159 = sadd.s32 %s158, 1
    %s160 = scalar_select %p157, %s158, %s159
    %p163 = pneg %p157
    %p164 = scmp.eq.s32.totalorder %s12, 1
    %p165 = por %p163, %p164
    %p166 = scmp.ne.s32.totalorder %s158, %s161
    %p167 = scmp.eq.s32.totalorder %s12, 0
    %p168 = por %p166, %p167
    %p169 = scmp.ne.s32.totalorder %s158, %s161
    %p170 = scmp.eq.s32.totalorder %s17, 1
    %p171 = por %p169, %p170
    %p172 = scmp.ne.s32.totalorder %s161, %s162
    %p173 = scmp.eq.s32.totalorder %s17, 0
    %p174 = por %p172, %p173
    %p175 = scmp.ne.s32.totalorder %s161, %s162
    %p176 = scmp.eq.s32.totalorder %s18, 1
    %p177 = por %p175, %p176
    %p179 = scmp.ne.s32.totalorder %s162, %s178
    %p180 = scmp.eq.s32.totalorder %s18, 0
    %p181 = por %p179, %p180
    %p182 = scmp.le.s32.totalorder 1, %s12
    %p183 = scmp.lt.s32.totalorder %s12, 3
    %p184 = pnand %p182, %p183
    %p185 = pneg %p184
    // Predicated region
    $region9: #{mutan_forward.2} parent=5 // pred_check
      _
    $region10: #{mutan_forward.2} parent=5 // pred_check_branch
      %187 = sbr.rel (%p184) target = $region12
    $region11: #{mutan_forward.2} parent=5 // pred_region
      %s188 = ssub.s32 %s12, 1
      // Predicated region
      $region13: #{mutan_forward.2} parent=11 // pred_check
        %p189 = pneg %p85
      $region14: #{mutan_forward.2} parent=11 // pred_check_branch
        %191 = sbr.rel (%p189) target = $region16
      $region15: #{mutan_forward.2} parent=11 // pred_region
        _
      $region16: #{mutan_forward.2} parent=11 // pred_fallthru
        _
      // Predicated region
      $region17: #{mutan_forward.2} parent=11 // pred_check
        %p192 = pneg %p106
      $region18: #{mutan_forward.2} parent=11 // pred_check_branch
        %194 = sbr.rel (%p192) target = $region20
      $region19: #{mutan_forward.2} parent=11 // pred_region
        _
      $region20: #{mutan_forward.2} parent=11 // pred_fallthru
        _
      // Predicated region
      $region21: #{mutan_forward.2} parent=11 // pred_check
        %p195 = pneg %p127
      $region22: #{mutan_forward.2} parent=11 // pred_check_branch
        %197 = sbr.rel (%p195) target = $region24
      $region23: #{mutan_forward.2} parent=11 // pred_region
        _
      $region24: #{mutan_forward.2} parent=11 // pred_fallthru
        _
      // Predicated region
      $region25: #{mutan_forward.2} parent=11 // pred_check
        %p198 = pneg %p148
      $region26: #{mutan_forward.2} parent=11 // pred_check_branch
        %200 = sbr.rel (%p198) target = $region28
      $region27: #{mutan_forward.2} parent=11 // pred_region
        _
      $region28: #{mutan_forward.2} parent=11 // pred_fallthru
        _
    $region12: #{mutan_forward.2} parent=5 // pred_fallthru
      _
    %p201 = scmp.lt.s32.totalorder %s12, 2
    // Predicated region
    $region29: #{mutan_forward.2} parent=5 // pred_check
      %p202 = pneg %p201
    $region30: #{mutan_forward.2} parent=5 // pred_check_branch
      %204 = sbr.rel (%p202) target = $region32
    $region31: #{mutan_forward.2} parent=5 // pred_region
      // Predicated region
      $region33: #{mutan_forward.2} parent=31 // pred_check
        %p205 = pneg %p32
      $region34: #{mutan_forward.2} parent=31 // pred_check_branch
        %207 = sbr.rel (%p205) target = $region36
      $region35: #{mutan_forward.2} parent=31 // pred_region
        %s208 = smul.u32 2, %s12
        %p209 = scmp.lt.s32.totalorder %s208, 3
        %s210 = scalar_select %p209, %s208, 3
        %s211 = smul.addr %s210, 4
        %s212 = scalar_lea.vmem %s0, %s211
        %s213 = smul.u32 2, %s12
      $region36: #{mutan_forward.2} parent=31 // pred_fallthru
        _
      // Predicated region
      $region37: #{mutan_forward.2} parent=31 // pred_check
        %p214 = pneg %p58
      $region38: #{mutan_forward.2} parent=31 // pred_check_branch
        %216 = sbr.rel (%p214) target = $region40
      $region39: #{mutan_forward.2} parent=31 // pred_region
        %s217 = smul.u32 2, %s12
        %p218 = scmp.lt.s32.totalorder %s217, 3
        %s219 = scalar_select %p218, %s217, 3
        %s220 = smul.addr %s219, 4
        %s221 = scalar_lea.vmem %s1, %s220
        %s222 = smul.u32 2, %s12
      $region40: #{mutan_forward.2} parent=31 // pred_fallthru
        _
    $region32: #{mutan_forward.2} parent=5 // pred_fallthru
      _
    %p223 = scmp.le.s32.totalorder 1, %s12
    %p224 = scmp.lt.s32.totalorder %s12, 3
    %p225 = pnand %p223, %p224
    %p226 = pneg %p225
    // Predicated region
    $region41: #{mutan_forward.2} parent=5 // pred_check
      _
    $region42: #{mutan_forward.2} parent=5 // pred_check_branch
      %228 = sbr.rel (%p225) target = $region44
    $region43: #{mutan_forward.2} parent=5 // pred_region
      %s229 = ssub.s32 %s12, 1
      %s230 = smul.u32 2, %s17
      %p231 = scmp.lt.s32.totalorder %s230, 3
      %s232 = scalar_select %p231, %s230, 3
      %s233 = smul.addr %s232, 4
      %s234 = scalar_lea.vmem %s0, %s233
      %p235 = pneg %p38
      %p236 = pneg %p35
      %s237 = smul.u32 2, %s17
      %p238 = scmp.lt.s32.totalorder %s237, 3
      %s239 = scalar_select %p238, %s237, 3
      %s240 = smul.addr %s239, 4
      %s241 = scalar_lea.vmem %s1, %s240
      %p242 = pneg %p64
      %p243 = pneg %p61
      %p244 = pneg %p85
      %p245 = pneg %p82
      %p246 = pneg %p106
      %p247 = pneg %p103
      %p248 = pneg %p127
      %p249 = pneg %p124
      %p250 = pneg %p148
      %p251 = pneg %p145
      %p252 = pneg %p174
      %p253 = pneg %p171
      %s254 = smul.u32 2, %s17
      %p255 = scmp.lt.s32.totalorder %s254, 3
      %s256 = scalar_select %p255, %s254, 3
      %s257 = smul.addr %s256, 4
      %s258 = scalar_lea.vmem %s6, %s257
      %s259 = smul.u32 2, %s17
      %p260 = scmp.lt.s32.totalorder %s259, 3
      %s261 = scalar_select %p260, %s259, 3
      %s262 = smul.addr %s261, 4
      %s263 = scalar_lea.vmem %s0, %s262
      %s264 = smul.u32 2, %s17
      %s265 = smul.u32 2, %s17
      %p266 = scmp.lt.s32.totalorder %s265, 3
      %s267 = scalar_select %p266, %s265, 3
      %s268 = smul.addr %s267, 4
      %s269 = scalar_lea.vmem %s1, %s268
      %s270 = smul.u32 2, %s17
      %s271 = smul.u32 2, %s17
      %p272 = scmp.lt.s32.totalorder %s271, 3
      %s273 = scalar_select %p272, %s271, 3
      %s274 = smul.addr %s273, 4
      %s275 = scalar_lea.vmem %s6, %s274
      %s276 = smul.u32 2, %s17
      %v278 = vld [vmem:[%s263] sm:$0xf]
      %v279 = vld [vmem:[%s263 + $0x4] sm:$0xf]
      %v280 = vld [vmem:[%s2] sm:$0xff]
      %v281 = vld [vmem:[%s2 + $0x8] sm:$0xff]
      %v282 = vld [vmem:[%s2 + $0x10] sm:$0xf]
      %v283 = vld [vmem:[%s2 + $0x14] sm:$0xff]
      %v284 = vld [vmem:[%s2 + $0x1c] sm:$0xff]
      %v285 = vld [vmem:[%s2 + $0x24] sm:$0xf]
      %v286 = vld [vmem:[%s2 + $0x28] sm:$0xff]
      %v287 = vld [vmem:[%s2 + $0x30] sm:$0xff]
      %v288 = vld [vmem:[%s2 + $0x38] sm:$0xf]
      %v289 = vld [vmem:[%s2 + $0x3c] sm:$0xff]
      %v290 = vld [vmem:[%s2 + $0x44] sm:$0xff]
      %v291 = vld [vmem:[%s2 + $0x4c] sm:$0xf]
      %v292 = vld [vmem:[%s2 + $0x50] sm:$0xff]
      %v293 = vld [vmem:[%s2 + $0x58] sm:$0xff]
      %v294 = vld [vmem:[%s2 + $0x60] sm:$0xf]
      %v295 = vld [vmem:[%s2 + $0x64] sm:$0xff]
      %v296 = vld [vmem:[%s2 + $0x6c] sm:$0xff]
      %v297 = vld [vmem:[%s2 + $0x74] sm:$0xf]
      %v298 = vld [vmem:[%s2 + $0x78] sm:$0xff]
      %v299 = vld [vmem:[%s2 + $0x80] sm:$0xff]
      %v300 = vld [vmem:[%s2 + $0x88] sm:$0xf]
      %v301 = vld [vmem:[%s2 + $0x8c] sm:$0xff]
      %v302 = vld [vmem:[%s2 + $0x94] sm:$0xff]
      %v303 = vld [vmem:[%s2 + $0x9c] sm:$0xf]
      %v304 = vld [vmem:[%s2 + $0xa0] sm:$0xff]
      %v305 = vld [vmem:[%s2 + $0xa8] sm:$0xff]
      %v306 = vld [vmem:[%s2 + $0xb0] sm:$0xf]
      %v307 = vld [vmem:[%s2 + $0xb4] sm:$0xff]
      %v308 = vld [vmem:[%s2 + $0xbc] sm:$0xff]
      %v309 = vld [vmem:[%s2 + $0xc4] sm:$0xf]
      %v310 = vld [vmem:[%s2 + $0xc8] sm:$0xff]
      %v311 = vld [vmem:[%s2 + $0xd0] sm:$0xff]
      %v312 = vld [vmem:[%s2 + $0xd8] sm:$0xf]
      %v313 = vld [vmem:[%s2 + $0xdc] sm:$0xff]
      %v314 = vld [vmem:[%s2 + $0xe4] sm:$0xff]
      %v315 = vld [vmem:[%s2 + $0xec] sm:$0xf]
      %v316 = vld [vmem:[%s2 + $0xf0] sm:$0xff]
      %v317 = vld [vmem:[%s2 + $0xf8] sm:$0xff]
      %v318 = vld [vmem:[%s2 + $0x100] sm:$0xf]
      %v319 = vld [vmem:[%s2 + $0x104] sm:$0xff]
      %v320 = vld [vmem:[%s2 + $0x10c] sm:$0xff]
      %v321 = vld [vmem:[%s2 + $0x114] sm:$0xf]
      %v322 = vld [vmem:[%s2 + $0x118] sm:$0xff]
      %v323 = vld [vmem:[%s2 + $0x120] sm:$0xff]
      %v324 = vld [vmem:[%s2 + $0x128] sm:$0xf]
      %v325 = vld [vmem:[%s2 + $0x12c] sm:$0xff]
      %v326 = vld [vmem:[%s2 + $0x134] sm:$0xff]
      %v327 = vld [vmem:[%s2 + $0x13c] sm:$0xf]
      %v328 = vld [vmem:[%s3] sm:$0x1f]
      %v330 = vlaneseq
      %v331 = vshrl.u32 %v330, 7
      %v332 = vsub.s32 0, %v331
      %v333 = vrot.slane %v328, %v332
      %v334 = vlaneseq
      %v335 = vshrl.u32 %v334, 7
      %v336 = vsub.s32 1, %v335
      %v337 = vrot.slane %v328, %v336
      %v338 = vlaneseq
      %v339 = vshrl.u32 %v338, 7
      %v340 = vsub.s32 2, %v339
      %v341 = vrot.slane %v328, %v340
      %v342 = vlaneseq
      %v343 = vshrl.u32 %v342, 7
      %v344 = vsub.s32 3, %v343
      %v345 = vrot.slane %v328, %v344
      %v346 = vlaneseq
      %v347 = vshrl.u32 %v346, 7
      %v348 = vsub.s32 4, %v347
      %v349 = vrot.slane %v328, %v348
      %v357 = vunpack.c.l.b16 %v278
      %v358 = vunpack.c.l.b16 %v279
      %v359 = vpack.c.b16 %v358, %v357
      %v409 = vunpack.c.l.b16 %v280
      %v410 = vunpack.c.h.b16 %v280
      %v411 = vunpack.c.l.b16 %v281
      %v412 = vunpack.c.h.b16 %v281
      %v413 = vunpack.c.l.b16 %v282
      %v414 = vunpack.c.l.b16 %v283
      %v415 = vunpack.c.h.b16 %v283
      %v416 = vunpack.c.l.b16 %v284
      %v417 = vunpack.c.h.b16 %v284
      %v418 = vunpack.c.l.b16 %v285
      %v419 = vunpack.c.l.b16 %v286
      %v420 = vunpack.c.h.b16 %v286
      %v421 = vunpack.c.l.b16 %v287
      %v422 = vunpack.c.h.b16 %v287
      %v423 = vunpack.c.l.b16 %v288
      %v424 = vunpack.c.l.b16 %v289
      %v425 = vunpack.c.h.b16 %v289
      %v426 = vunpack.c.l.b16 %v290
      %v427 = vunpack.c.h.b16 %v290
      %v428 = vunpack.c.l.b16 %v291
      %v429 = vunpack.c.l.b16 %v292
      %v430 = vunpack.c.h.b16 %v292
      %v431 = vunpack.c.l.b16 %v293
      %v432 = vunpack.c.h.b16 %v293
      %v433 = vunpack.c.l.b16 %v294
      %v434 = vunpack.c.l.b16 %v295
      %v435 = vunpack.c.h.b16 %v295
      %v436 = vunpack.c.l.b16 %v296
      %v437 = vunpack.c.h.b16 %v296
      %v438 = vunpack.c.l.b16 %v297
      %v439 = vunpack.c.l.b16 %v298
      %v440 = vunpack.c.h.b16 %v298
      %v441 = vunpack.c.l.b16 %v299
      %v442 = vunpack.c.h.b16 %v299
      %v443 = vunpack.c.l.b16 %v300
      %v444 = vunpack.c.l.b16 %v301
      %v445 = vunpack.c.h.b16 %v301
      %v446 = vunpack.c.l.b16 %v302
      %v447 = vunpack.c.h.b16 %v302
      %v448 = vunpack.c.l.b16 %v303
      %v449 = vunpack.c.l.b16 %v304
      %v450 = vunpack.c.h.b16 %v304
      %v451 = vunpack.c.l.b16 %v305
      %v452 = vunpack.c.h.b16 %v305
      %v453 = vunpack.c.l.b16 %v306
      %v454 = vunpack.c.l.b16 %v307
      %v455 = vunpack.c.h.b16 %v307
      %v456 = vunpack.c.l.b16 %v308
      %v457 = vunpack.c.h.b16 %v308
      %v458 = vunpack.c.l.b16 %v309
      %v459 = vunpack.c.l.b16 %v310
      %v460 = vunpack.c.h.b16 %v310
      %v461 = vunpack.c.l.b16 %v311
      %v462 = vunpack.c.h.b16 %v311
      %v463 = vunpack.c.l.b16 %v312
      %v464 = vunpack.c.l.b16 %v313
      %v465 = vunpack.c.h.b16 %v313
      %v466 = vunpack.c.l.b16 %v314
      %v467 = vunpack.c.h.b16 %v314
      %v468 = vunpack.c.l.b16 %v315
      %v469 = vunpack.c.l.b16 %v316
      %v470 = vunpack.c.h.b16 %v316
      %v471 = vunpack.c.l.b16 %v317
      %v472 = vunpack.c.h.b16 %v317
      %v473 = vunpack.c.l.b16 %v318
      %v474 = vunpack.c.l.b16 %v319
      %v475 = vunpack.c.h.b16 %v319
      %v476 = vunpack.c.l.b16 %v320
      %v477 = vunpack.c.h.b16 %v320
      %v478 = vunpack.c.l.b16 %v321
      %v479 = vunpack.c.l.b16 %v322
      %v480 = vunpack.c.h.b16 %v322
      %v481 = vunpack.c.l.b16 %v323
      %v482 = vunpack.c.h.b16 %v323
      %v483 = vunpack.c.l.b16 %v324
      %v484 = vunpack.c.l.b16 %v325
      %v485 = vunpack.c.h.b16 %v325
      %v486 = vunpack.c.l.b16 %v326
      %v487 = vunpack.c.h.b16 %v326
      %v488 = vunpack.c.l.b16 %v327
      %v489 = vpack.c.b16 %v414, %v409
      %v490 = vpack.c.b16 %v415, %v410
      %v491 = vpack.c.b16 %v416, %v411
      %v492 = vpack.c.b16 %v417, %v412
      %v493 = vpack.c.b16 %v418, %v413
      %v494 = vpack.c.b16 %v424, %v419
      %v495 = vpack.c.b16 %v425, %v420
      %v496 = vpack.c.b16 %v426, %v421
      %v497 = vpack.c.b16 %v427, %v422
      %v498 = vpack.c.b16 %v428, %v423
      %v499 = vpack.c.b16 %v434, %v429
      %v500 = vpack.c.b16 %v435, %v430
      %v501 = vpack.c.b16 %v436, %v431
      %v502 = vpack.c.b16 %v437, %v432
      %v503 = vpack.c.b16 %v438, %v433
      %v504 = vpack.c.b16 %v444, %v439
      %v505 = vpack.c.b16 %v445, %v440
      %v506 = vpack.c.b16 %v446, %v441
      %v507 = vpack.c.b16 %v447, %v442
      %v508 = vpack.c.b16 %v448, %v443
      %v509 = vpack.c.b16 %v454, %v449
      %v510 = vpack.c.b16 %v455, %v450
      %v511 = vpack.c.b16 %v456, %v451
      %v512 = vpack.c.b16 %v457, %v452
      %v513 = vpack.c.b16 %v458, %v453
      %v514 = vpack.c.b16 %v464, %v459
      %v515 = vpack.c.b16 %v465, %v460
      %v516 = vpack.c.b16 %v466, %v461
      %v517 = vpack.c.b16 %v467, %v462
      %v518 = vpack.c.b16 %v468, %v463
      %v519 = vpack.c.b16 %v474, %v469
      %v520 = vpack.c.b16 %v475, %v470
      %v521 = vpack.c.b16 %v476, %v471
      %v522 = vpack.c.b16 %v477, %v472
      %v523 = vpack.c.b16 %v478, %v473
      %v524 = vpack.c.b16 %v484, %v479
      %v525 = vpack.c.b16 %v485, %v480
      %v526 = vpack.c.b16 %v486, %v481
      %v527 = vpack.c.b16 %v487, %v482
      %v528 = vpack.c.b16 %v488, %v483
      %569 = vmatprep.subr.bf16.mxu0 %v490
      %570 = vmatpush1.bf16.msra.mxu0 %v489
      %571 = vmatprep.subr.bf16.mxu0 %v495
      %572 = vmatpush1.bf16.msra.mxu0 %v494
      %573 = vmatprep.subr.bf16.mxu0 %v500
      %574 = vmatpush1.bf16.msra.mxu0 %v499
      %575 = vmatprep.subr.bf16.mxu0 %v505
      %576 = vmatpush1.bf16.msra.mxu0 %v504
      %577 = vmatprep.subr.bf16.mxu0 %v510
      %578 = vmatpush1.bf16.msra.mxu0 %v509
      %579 = vmatprep.subr.bf16.mxu0 %v515
      %580 = vmatpush1.bf16.msra.mxu0 %v514
      %581 = vmatprep.subr.bf16.mxu0 %v520
      %582 = vmatpush1.bf16.msra.mxu0 %v519
      %583 = vmatprep.subr.bf16.mxu0 %v525
      %584 = vmatpush1.bf16.msra.mxu0 %v524
      %585 = vmatprep.subr.bf16.mxu0 0
      %586 = vmatpush1.bf16.msra.mxu0 0
      %587 = vmatprep.subr.bf16.mxu0 0
      %588 = vmatpush1.bf16.msra.mxu0 0
      %589 = vmatprep.subr.bf16.mxu0 0
      %590 = vmatpush1.bf16.msra.mxu0 0
      %591 = vmatprep.subr.bf16.mxu0 0
      %592 = vmatpush1.bf16.msra.mxu0 0
      %593 = vmatprep.subr.bf16.mxu0 0
      %594 = vmatpush1.bf16.msra.mxu0 0
      %595 = vmatprep.subr.bf16.mxu0 0
      %596 = vmatpush1.bf16.msra.mxu0 0
      %597 = vmatprep.subr.bf16.mxu0 0
      %598 = vmatpush1.bf16.msra.mxu0 0
      %599 = vmatprep.subr.bf16.mxu0 0
      %600 = vmatpush1.bf16.msra.mxu0 0
      %601 = vmatprep.mubr.bf16.mxu0 0
      %602 = vmatmul.mubr.bf16.gmra.mrb[0].mxu0 %v359
      %v603 = vpop.f32.mrb[0].mxu0
      %v604 = vadd.f32 %v333, %v603
      %v605 = vpop.f32.mrb[0].mxu0
      %v606 = vadd.f32 %v337, %v605
      %v607 = vpop.f32.mrb[0].mxu0
      %v608 = vadd.f32 %v333, %v607
      %v609 = vpop.f32.mrb[0].mxu0
      %v610 = vadd.f32 %v337, %v609
      %611 = vdwg.mxu0
      %612 = vmatprep.subr.bf16.mxu0 %v492
      %613 = vmatpush1.bf16.msra.mxu0 %v491
      %614 = vmatprep.subr.bf16.mxu0 %v497
      %615 = vmatpush1.bf16.msra.mxu0 %v496
      %616 = vmatprep.subr.bf16.mxu0 %v502
      %617 = vmatpush1.bf16.msra.mxu0 %v501
      %618 = vmatprep.subr.bf16.mxu0 %v507
      %619 = vmatpush1.bf16.msra.mxu0 %v506
      %620 = vmatprep.subr.bf16.mxu0 %v512
      %621 = vmatpush1.bf16.msra.mxu0 %v511
      %622 = vmatprep.subr.bf16.mxu0 %v517
      %623 = vmatpush1.bf16.msra.mxu0 %v516
      %624 = vmatprep.subr.bf16.mxu0 %v522
      %625 = vmatpush1.bf16.msra.mxu0 %v521
      %626 = vmatprep.subr.bf16.mxu0 %v527
      %627 = vmatpush1.bf16.msra.mxu0 %v526
      %628 = vmatprep.subr.bf16.mxu0 0
      %629 = vmatpush1.bf16.msra.mxu0 0
      %630 = vmatprep.subr.bf16.mxu0 0
      %631 = vmatpush1.bf16.msra.mxu0 0
      %632 = vmatprep.subr.bf16.mxu0 0
      %633 = vmatpush1.bf16.msra.mxu0 0
      %634 = vmatprep.subr.bf16.mxu0 0
      %635 = vmatpush1.bf16.msra.mxu0 0
      %636 = vmatprep.subr.bf16.mxu0 0
      %637 = vmatpush1.bf16.msra.mxu0 0
      %638 = vmatprep.subr.bf16.mxu0 0
      %639 = vmatpush1.bf16.msra.mxu0 0
      %640 = vmatprep.subr.bf16.mxu0 0
      %641 = vmatpush1.bf16.msra.mxu0 0
      %642 = vmatprep.subr.bf16.mxu0 0
      %643 = vmatpush1.bf16.msra.mxu0 0
      %644 = vmatprep.mubr.bf16.mxu0 0
      %645 = vmatmul.mubr.bf16.gmra.mrb[0].mxu0 %v359
      %v646 = vpop.f32.mrb[0].mxu0
      %v647 = vadd.f32 %v341, %v646
      %v648 = vpop.f32.mrb[0].mxu0
      %v649 = vadd.f32 %v345, %v648
      %v650 = vpop.f32.mrb[0].mxu0
      %v651 = vadd.f32 %v341, %v650
      %v652 = vpop.f32.mrb[0].mxu0
      %v653 = vadd.f32 %v345, %v652
      %654 = vdwg.mxu0
      %655 = vmatprep.subr.bf16.mxu0 0
      %656 = vmatpush1.bf16.msra.mxu0 %v493
      %657 = vmatprep.subr.bf16.mxu0 0
      %658 = vmatpush1.bf16.msra.mxu0 %v498
      %659 = vmatprep.subr.bf16.mxu0 0
      %660 = vmatpush1.bf16.msra.mxu0 %v503
      %661 = vmatprep.subr.bf16.mxu0 0
      %662 = vmatpush1.bf16.msra.mxu0 %v508
      %663 = vmatprep.subr.bf16.mxu0 0
      %664 = vmatpush1.bf16.msra.mxu0 %v513
      %665 = vmatprep.subr.bf16.mxu0 0
      %666 = vmatpush1.bf16.msra.mxu0 %v518
      %667 = vmatprep.subr.bf16.mxu0 0
      %668 = vmatpush1.bf16.msra.mxu0 %v523
      %669 = vmatprep.subr.bf16.mxu0 0
      %670 = vmatpush1.bf16.msra.mxu0 %v528
      %671 = vmatprep.subr.bf16.mxu0 0
      %672 = vmatpush1.bf16.msra.mxu0 0
      %673 = vmatprep.subr.bf16.mxu0 0
      %674 = vmatpush1.bf16.msra.mxu0 0
      %675 = vmatprep.subr.bf16.mxu0 0
      %676 = vmatpush1.bf16.msra.mxu0 0
      %677 = vmatprep.subr.bf16.mxu0 0
      %678 = vmatpush1.bf16.msra.mxu0 0
      %679 = vmatprep.subr.bf16.mxu0 0
      %680 = vmatpush1.bf16.msra.mxu0 0
      %681 = vmatprep.subr.bf16.mxu0 0
      %682 = vmatpush1.bf16.msra.mxu0 0
      %683 = vmatprep.subr.bf16.mxu0 0
      %684 = vmatpush1.bf16.msra.mxu0 0
      %685 = vmatprep.subr.bf16.mxu0 0
      %686 = vmatpush1.bf16.msra.mxu0 0
      %687 = vmatprep.mubr.bf16.mxu0 0
      %688 = vmatmul.mubr.bf16.gmra.mrb[0].mxu0 %v359
      %v689 = vpop.f32.mrb[0].mxu0
      %v690 = vadd.f32 %v349, %v689
      %v691 = vpop.f32.mrb[0].mxu0
      %v692 = vpop.f32.mrb[0].mxu0
      %v693 = vadd.f32 %v349, %v692
      %v694 = vpop.f32.mrb[0].mxu0
      %695 = vdwg.mxu0
      %v696 = vmax.f32 %v604, 0.0
      %v697 = vmax.f32 %v606, 0.0
      %v698 = vmax.f32 %v647, 0.0
      %v699 = vmax.f32 %v649, 0.0
      %v700 = vmax.f32 %v690, 0.0
      %v701 = vmax.f32 %v608, 0.0
      %v702 = vmax.f32 %v610, 0.0
      %v703 = vmax.f32 %v651, 0.0
      %v704 = vmax.f32 %v653, 0.0
      %v705 = vmax.f32 %v693, 0.0
      %v706 = vld [vmem:[%s269] sm:$0xf]
      %v707 = vld [vmem:[%s269 + $0x4] sm:$0xf]
      %v708 = vld [vmem:[%s4] sm:$0xff]
      %v709 = vld [vmem:[%s4 + $0x8] sm:$0xff]
      %v710 = vld [vmem:[%s4 + $0x10] sm:$0xf]
      %v711 = vld [vmem:[%s4 + $0x14] sm:$0xff]
      %v712 = vld [vmem:[%s4 + $0x1c] sm:$0xff]
      %v713 = vld [vmem:[%s4 + $0x24] sm:$0xf]
      %v714 = vld [vmem:[%s4 + $0x28] sm:$0xff]
      %v715 = vld [vmem:[%s4 + $0x30] sm:$0xff]
      %v716 = vld [vmem:[%s4 + $0x38] sm:$0xf]
      %v717 = vld [vmem:[%s4 + $0x3c] sm:$0xff]
      %v718 = vld [vmem:[%s4 + $0x44] sm:$0xff]
      %v719 = vld [vmem:[%s4 + $0x4c] sm:$0xf]
      %v720 = vld [vmem:[%s4 + $0x50] sm:$0xff]
      %v721 = vld [vmem:[%s4 + $0x58] sm:$0xff]
      %v722 = vld [vmem:[%s4 + $0x60] sm:$0xf]
      %v723 = vld [vmem:[%s4 + $0x64] sm:$0xff]
      %v724 = vld [vmem:[%s4 + $0x6c] sm:$0xff]
      %v725 = vld [vmem:[%s4 + $0x74] sm:$0xf]
      %v726 = vld [vmem:[%s4 + $0x78] sm:$0xff]
      %v727 = vld [vmem:[%s4 + $0x80] sm:$0xff]
      %v728 = vld [vmem:[%s4 + $0x88] sm:$0xf]
      %v729 = vld [vmem:[%s4 + $0x8c] sm:$0xff]
      %v730 = vld [vmem:[%s4 + $0x94] sm:$0xff]
      %v731 = vld [vmem:[%s4 + $0x9c] sm:$0xf]
      %v732 = vld [vmem:[%s4 + $0xa0] sm:$0xff]
      %v733 = vld [vmem:[%s4 + $0xa8] sm:$0xff]
      %v734 = vld [vmem:[%s4 + $0xb0] sm:$0xf]
      %v735 = vld [vmem:[%s4 + $0xb4] sm:$0xff]
      %v736 = vld [vmem:[%s4 + $0xbc] sm:$0xff]
      %v737 = vld [vmem:[%s4 + $0xc4] sm:$0xf]
      %v738 = vld [vmem:[%s4 + $0xc8] sm:$0xff]
      %v739 = vld [vmem:[%s4 + $0xd0] sm:$0xff]
      %v740 = vld [vmem:[%s4 + $0xd8] sm:$0xf]
      %v741 = vld [vmem:[%s4 + $0xdc] sm:$0xff]
      %v742 = vld [vmem:[%s4 + $0xe4] sm:$0xff]
      %v743 = vld [vmem:[%s4 + $0xec] sm:$0xf]
      %v744 = vld [vmem:[%s4 + $0xf0] sm:$0xff]
      %v745 = vld [vmem:[%s4 + $0xf8] sm:$0xff]
      %v746 = vld [vmem:[%s4 + $0x100] sm:$0xf]
      %v747 = vld [vmem:[%s4 + $0x104] sm:$0xff]
      %v748 = vld [vmem:[%s4 + $0x10c] sm:$0xff]
      %v749 = vld [vmem:[%s4 + $0x114] sm:$0xf]
      %v750 = vld [vmem:[%s4 + $0x118] sm:$0xff]
      %v751 = vld [vmem:[%s4 + $0x120] sm:$0xff]
      %v752 = vld [vmem:[%s4 + $0x128] sm:$0xf]
      %v753 = vld [vmem:[%s4 + $0x12c] sm:$0xff]
      %v754 = vld [vmem:[%s4 + $0x134] sm:$0xff]
      %v755 = vld [vmem:[%s4 + $0x13c] sm:$0xf]
      %v756 = vld [vmem:[%s5] sm:$0x1f]
      %v758 = vlaneseq
      %v759 = vshrl.u32 %v758, 7
      %v760 = vsub.s32 0, %v759
      %v761 = vrot.slane %v756, %v760
      %v762 = vlaneseq
      %v763 = vshrl.u32 %v762, 7
      %v764 = vsub.s32 1, %v763
      %v765 = vrot.slane %v756, %v764
      %v766 = vlaneseq
      %v767 = vshrl.u32 %v766, 7
      %v768 = vsub.s32 2, %v767
      %v769 = vrot.slane %v756, %v768
      %v770 = vlaneseq
      %v771 = vshrl.u32 %v770, 7
      %v772 = vsub.s32 3, %v771
      %v773 = vrot.slane %v756, %v772
      %v774 = vlaneseq
      %v775 = vshrl.u32 %v774, 7
      %v776 = vsub.s32 4, %v775
      %v777 = vrot.slane %v756, %v776
      %v785 = vunpack.c.l.b16 %v706
      %v786 = vunpack.c.l.b16 %v707
      %v787 = vpack.c.b16 %v786, %v785
      %v837 = vunpack.c.l.b16 %v708
      %v838 = vunpack.c.h.b16 %v708
      %v839 = vunpack.c.l.b16 %v709
      %v840 = vunpack.c.h.b16 %v709
      %v841 = vunpack.c.l.b16 %v710
      %v842 = vunpack.c.l.b16 %v711
      %v843 = vunpack.c.h.b16 %v711
      %v844 = vunpack.c.l.b16 %v712
      %v845 = vunpack.c.h.b16 %v712
      %v846 = vunpack.c.l.b16 %v713
      %v847 = vunpack.c.l.b16 %v714
      %v848 = vunpack.c.h.b16 %v714
      %v849 = vunpack.c.l.b16 %v715
      %v850 = vunpack.c.h.b16 %v715
      %v851 = vunpack.c.l.b16 %v716
      %v852 = vunpack.c.l.b16 %v717
      %v853 = vunpack.c.h.b16 %v717
      %v854 = vunpack.c.l.b16 %v718
      %v855 = vunpack.c.h.b16 %v718
      %v856 = vunpack.c.l.b16 %v719
      %v857 = vunpack.c.l.b16 %v720
      %v858 = vunpack.c.h.b16 %v720
      %v859 = vunpack.c.l.b16 %v721
      %v860 = vunpack.c.h.b16 %v721
      %v861 = vunpack.c.l.b16 %v722
      %v862 = vunpack.c.l.b16 %v723
      %v863 = vunpack.c.h.b16 %v723
      %v864 = vunpack.c.l.b16 %v724
      %v865 = vunpack.c.h.b16 %v724
      %v866 = vunpack.c.l.b16 %v725
      %v867 = vunpack.c.l.b16 %v726
      %v868 = vunpack.c.h.b16 %v726
      %v869 = vunpack.c.l.b16 %v727
      %v870 = vunpack.c.h.b16 %v727
      %v871 = vunpack.c.l.b16 %v728
      %v872 = vunpack.c.l.b16 %v729
      %v873 = vunpack.c.h.b16 %v729
      %v874 = vunpack.c.l.b16 %v730
      %v875 = vunpack.c.h.b16 %v730
      %v876 = vunpack.c.l.b16 %v731
      %v877 = vunpack.c.l.b16 %v732
      %v878 = vunpack.c.h.b16 %v732
      %v879 = vunpack.c.l.b16 %v733
      %v880 = vunpack.c.h.b16 %v733
      %v881 = vunpack.c.l.b16 %v734
      %v882 = vunpack.c.l.b16 %v735
      %v883 = vunpack.c.h.b16 %v735
      %v884 = vunpack.c.l.b16 %v736
      %v885 = vunpack.c.h.b16 %v736
      %v886 = vunpack.c.l.b16 %v737
      %v887 = vunpack.c.l.b16 %v738
      %v888 = vunpack.c.h.b16 %v738
      %v889 = vunpack.c.l.b16 %v739
      %v890 = vunpack.c.h.b16 %v739
      %v891 = vunpack.c.l.b16 %v740
      %v892 = vunpack.c.l.b16 %v741
      %v893 = vunpack.c.h.b16 %v741
      %v894 = vunpack.c.l.b16 %v742
      %v895 = vunpack.c.h.b16 %v742
      %v896 = vunpack.c.l.b16 %v743
      %v897 = vunpack.c.l.b16 %v744
      %v898 = vunpack.c.h.b16 %v744
      %v899 = vunpack.c.l.b16 %v745
      %v900 = vunpack.c.h.b16 %v745
      %v901 = vunpack.c.l.b16 %v746
      %v902 = vunpack.c.l.b16 %v747
      %v903 = vunpack.c.h.b16 %v747
      %v904 = vunpack.c.l.b16 %v748
      %v905 = vunpack.c.h.b16 %v748
      %v906 = vunpack.c.l.b16 %v749
      %v907 = vunpack.c.l.b16 %v750
      %v908 = vunpack.c.h.b16 %v750
      %v909 = vunpack.c.l.b16 %v751
      %v910 = vunpack.c.h.b16 %v751
      %v911 = vunpack.c.l.b16 %v752
      %v912 = vunpack.c.l.b16 %v753
      %v913 = vunpack.c.h.b16 %v753
      %v914 = vunpack.c.l.b16 %v754
      %v915 = vunpack.c.h.b16 %v754
      %v916 = vunpack.c.l.b16 %v755
      %v917 = vpack.c.b16 %v842, %v837
      %v918 = vpack.c.b16 %v843, %v838
      %v919 = vpack.c.b16 %v844, %v839
      %v920 = vpack.c.b16 %v845, %v840
      %v921 = vpack.c.b16 %v846, %v841
      %v922 = vpack.c.b16 %v852, %v847
      %v923 = vpack.c.b16 %v853, %v848
      %v924 = vpack.c.b16 %v854, %v849
      %v925 = vpack.c.b16 %v855, %v850
      %v926 = vpack.c.b16 %v856, %v851
      %v927 = vpack.c.b16 %v862, %v857
      %v928 = vpack.c.b16 %v863, %v858
      %v929 = vpack.c.b16 %v864, %v859
      %v930 = vpack.c.b16 %v865, %v860
      %v931 = vpack.c.b16 %v866, %v861
      %v932 = vpack.c.b16 %v872, %v867
      %v933 = vpack.c.b16 %v873, %v868
      %v934 = vpack.c.b16 %v874, %v869
      %v935 = vpack.c.b16 %v875, %v870
      %v936 = vpack.c.b16 %v876, %v871
      %v937 = vpack.c.b16 %v882, %v877
      %v938 = vpack.c.b16 %v883, %v878
      %v939 = vpack.c.b16 %v884, %v879
      %v940 = vpack.c.b16 %v885, %v880
      %v941 = vpack.c.b16 %v886, %v881
      %v942 = vpack.c.b16 %v892, %v887
      %v943 = vpack.c.b16 %v893, %v888
      %v944 = vpack.c.b16 %v894, %v889
      %v945 = vpack.c.b16 %v895, %v890
      %v946 = vpack.c.b16 %v896, %v891
      %v947 = vpack.c.b16 %v902, %v897
      %v948 = vpack.c.b16 %v903, %v898
      %v949 = vpack.c.b16 %v904, %v899
      %v950 = vpack.c.b16 %v905, %v900
      %v951 = vpack.c.b16 %v906, %v901
      %v952 = vpack.c.b16 %v912, %v907
      %v953 = vpack.c.b16 %v913, %v908
      %v954 = vpack.c.b16 %v914, %v909
      %v955 = vpack.c.b16 %v915, %v910
      %v956 = vpack.c.b16 %v916, %v911
      %997 = vmatprep.subr.bf16.mxu0 %v918
      %998 = vmatpush1.bf16.msra.mxu0 %v917
      %999 = vmatprep.subr.bf16.mxu0 %v923
      %1000 = vmatpush1.bf16.msra.mxu0 %v922
      %1001 = vmatprep.subr.bf16.mxu0 %v928
      %1002 = vmatpush1.bf16.msra.mxu0 %v927
      %1003 = vmatprep.subr.bf16.mxu0 %v933
      %1004 = vmatpush1.bf16.msra.mxu0 %v932
      %1005 = vmatprep.subr.bf16.mxu0 %v938
      %1006 = vmatpush1.bf16.msra.mxu0 %v937
      %1007 = vmatprep.subr.bf16.mxu0 %v943
      %1008 = vmatpush1.bf16.msra.mxu0 %v942
      %1009 = vmatprep.subr.bf16.mxu0 %v948
      %1010 = vmatpush1.bf16.msra.mxu0 %v947
      %1011 = vmatprep.subr.bf16.mxu0 %v953
      %1012 = vmatpush1.bf16.msra.mxu0 %v952
      %1013 = vmatprep.subr.bf16.mxu0 0
      %1014 = vmatpush1.bf16.msra.mxu0 0
      %1015 = vmatprep.subr.bf16.mxu0 0
      %1016 = vmatpush1.bf16.msra.mxu0 0
      %1017 = vmatprep.subr.bf16.mxu0 0
      %1018 = vmatpush1.bf16.msra.mxu0 0
      %1019 = vmatprep.subr.bf16.mxu0 0
      %1020 = vmatpush1.bf16.msra.mxu0 0
      %1021 = vmatprep.subr.bf16.mxu0 0
      %1022 = vmatpush1.bf16.msra.mxu0 0
      %1023 = vmatprep.subr.bf16.mxu0 0
      %1024 = vmatpush1.bf16.msra.mxu0 0
      %1025 = vmatprep.subr.bf16.mxu0 0
      %1026 = vmatpush1.bf16.msra.mxu0 0
      %1027 = vmatprep.subr.bf16.mxu0 0
      %1028 = vmatpush1.bf16.msra.mxu0 0
      %1029 = vmatprep.mubr.bf16.mxu0 0
      %1030 = vmatmul.mubr.bf16.gmra.mrb[0].mxu0 %v787
      %v1031 = vpop.f32.mrb[0].mxu0
      %v1032 = vadd.f32 %v761, %v1031
      %v1033 = vpop.f32.mrb[0].mxu0
      %v1034 = vadd.f32 %v765, %v1033
      %v1035 = vpop.f32.mrb[0].mxu0
      %v1036 = vadd.f32 %v761, %v1035
      %v1037 = vpop.f32.mrb[0].mxu0
      %v1038 = vadd.f32 %v765, %v1037
      %1039 = vdwg.mxu0
      %1040 = vmatprep.subr.bf16.mxu0 %v920
      %1041 = vmatpush1.bf16.msra.mxu0 %v919
      %1042 = vmatprep.subr.bf16.mxu0 %v925
      %1043 = vmatpush1.bf16.msra.mxu0 %v924
      %1044 = vmatprep.subr.bf16.mxu0 %v930
      %1045 = vmatpush1.bf16.msra.mxu0 %v929
      %1046 = vmatprep.subr.bf16.mxu0 %v935
      %1047 = vmatpush1.bf16.msra.mxu0 %v934
      %1048 = vmatprep.subr.bf16.mxu0 %v940
      %1049 = vmatpush1.bf16.msra.mxu0 %v939
      %1050 = vmatprep.subr.bf16.mxu0 %v945
      %1051 = vmatpush1.bf16.msra.mxu0 %v944
      %1052 = vmatprep.subr.bf16.mxu0 %v950
      %1053 = vmatpush1.bf16.msra.mxu0 %v949
      %1054 = vmatprep.subr.bf16.mxu0 %v955
      %1055 = vmatpush1.bf16.msra.mxu0 %v954
      %1056 = vmatprep.subr.bf16.mxu0 0
      %1057 = vmatpush1.bf16.msra.mxu0 0
      %1058 = vmatprep.subr.bf16.mxu0 0
      %1059 = vmatpush1.bf16.msra.mxu0 0
      %1060 = vmatprep.subr.bf16.mxu0 0
      %1061 = vmatpush1.bf16.msra.mxu0 0
      %1062 = vmatprep.subr.bf16.mxu0 0
      %1063 = vmatpush1.bf16.msra.mxu0 0
      %1064 = vmatprep.subr.bf16.mxu0 0
      %1065 = vmatpush1.bf16.msra.mxu0 0
      %1066 = vmatprep.subr.bf16.mxu0 0
      %1067 = vmatpush1.bf16.msra.mxu0 0
      %1068 = vmatprep.subr.bf16.mxu0 0
      %1069 = vmatpush1.bf16.msra.mxu0 0
      %1070 = vmatprep.subr.bf16.mxu0 0
      %1071 = vmatpush1.bf16.msra.mxu0 0
      %1072 = vmatprep.mubr.bf16.mxu0 0
      %1073 = vmatmul.mubr.bf16.gmra.mrb[0].mxu0 %v787
      %v1074 = vpop.f32.mrb[0].mxu0
      %v1075 = vadd.f32 %v769, %v1074
      %v1076 = vpop.f32.mrb[0].mxu0
      %v1077 = vadd.f32 %v773, %v1076
      %v1078 = vpop.f32.mrb[0].mxu0
      %v1079 = vadd.f32 %v769, %v1078
      %v1080 = vpop.f32.mrb[0].mxu0
      %v1081 = vadd.f32 %v773, %v1080
      %1082 = vdwg.mxu0
      %1083 = vmatprep.subr.bf16.mxu0 0
      %1084 = vmatpush1.bf16.msra.mxu0 %v921
      %1085 = vmatprep.subr.bf16.mxu0 0
      %1086 = vmatpush1.bf16.msra.mxu0 %v926
      %1087 = vmatprep.subr.bf16.mxu0 0
      %1088 = vmatpush1.bf16.msra.mxu0 %v931
      %1089 = vmatprep.subr.bf16.mxu0 0
      %1090 = vmatpush1.bf16.msra.mxu0 %v936
      %1091 = vmatprep.subr.bf16.mxu0 0
      %1092 = vmatpush1.bf16.msra.mxu0 %v941
      %1093 = vmatprep.subr.bf16.mxu0 0
      %1094 = vmatpush1.bf16.msra.mxu0 %v946
      %1095 = vmatprep.subr.bf16.mxu0 0
      %1096 = vmatpush1.bf16.msra.mxu0 %v951
      %1097 = vmatprep.subr.bf16.mxu0 0
      %1098 = vmatpush1.bf16.msra.mxu0 %v956
      %1099 = vmatprep.subr.bf16.mxu0 0
      %1100 = vmatpush1.bf16.msra.mxu0 0
      %1101 = vmatprep.subr.bf16.mxu0 0
      %1102 = vmatpush1.bf16.msra.mxu0 0
      %1103 = vmatprep.subr.bf16.mxu0 0
      %1104 = vmatpush1.bf16.msra.mxu0 0
      %1105 = vmatprep.subr.bf16.mxu0 0
      %1106 = vmatpush1.bf16.msra.mxu0 0
      %1107 = vmatprep.subr.bf16.mxu0 0
      %1108 = vmatpush1.bf16.msra.mxu0 0
      %1109 = vmatprep.subr.bf16.mxu0 0
      %1110 = vmatpush1.bf16.msra.mxu0 0
      %1111 = vmatprep.subr.bf16.mxu0 0
      %1112 = vmatpush1.bf16.msra.mxu0 0
      %1113 = vmatprep.subr.bf16.mxu0 0
      %1114 = vmatpush1.bf16.msra.mxu0 0
      %1115 = vmatprep.mubr.bf16.mxu0 0
      %1116 = vmatmul.mubr.bf16.gmra.mrb[0].mxu0 %v787
      %v1117 = vpop.f32.mrb[0].mxu0
      %v1118 = vadd.f32 %v777, %v1117
      %v1119 = vpop.f32.mrb[0].mxu0
      %v1120 = vpop.f32.mrb[0].mxu0
      %v1121 = vadd.f32 %v777, %v1120
      %v1122 = vpop.f32.mrb[0].mxu0
      %1123 = vdwg.mxu0
      %v1124 = vmax.f32 %v1032, 0.0
      %v1125 = vmax.f32 %v1034, 0.0
      %v1126 = vmax.f32 %v1075, 0.0
      %v1127 = vmax.f32 %v1077, 0.0
      %v1128 = vmax.f32 %v1118, 0.0
      %v1129 = vmax.f32 %v1036, 0.0
      %v1130 = vmax.f32 %v1038, 0.0
      %v1131 = vmax.f32 %v1079, 0.0
      %v1132 = vmax.f32 %v1081, 0.0
      %v1133 = vmax.f32 %v1121, 0.0
      %v1134 = vmul.f32 %v696, %v1124
      %v1135 = vmul.f32 %v697, %v1125
      %v1136 = vmul.f32 %v698, %v1126
      %v1137 = vmul.f32 %v699, %v1127
      %v1138 = vmul.f32 %v700, %v1128
      %v1139 = vmul.f32 %v701, %v1129
      %v1140 = vmul.f32 %v702, %v1130
      %v1141 = vmul.f32 %v703, %v1131
      %v1142 = vmul.f32 %v704, %v1132
      %v1143 = vmul.f32 %v705, %v1133
      %v1144 = vadd.f32 %v1134, %v1135
      %v1145 = vadd.f32 %v1139, %v1140
      %v1146 = vadd.f32 %v1144, %v1136
      %v1147 = vadd.f32 %v1145, %v1141
      %v1148 = vadd.f32 %v1146, %v1137
      %v1149 = vadd.f32 %v1147, %v1142
      %v1150 = vadd.f32 %v1148, %v1138
      %v1151 = vadd.f32 %v1149, %v1143
      %v1152 = vmax.f32 %v1150, 0.0
      %v1153 = vmax.f32 %v1151, 0.0
      %v1154 = vpack.c.bf16 %v1153, %v1152
      %v1156 = vunpack.c.l.b16 %v1154
      %v1157 = vunpack.c.h.b16 %v1154
      %v1158 = vpack.c.b16 %v1156, %v1156
      %v1159 = vpack.c.b16 %v1157, %v1157
      %1162 = vst [vmem:[%s275] sm:$0xf] %v1158
      %1163 = vst [vmem:[%s275 + $0x4] sm:$0xf] %v1159
      %s1164 = smul.u32 2, %s17
      %p1165 = scmp.lt.s32.totalorder %s1164, 3
      %s1166 = scalar_select %p1165, %s1164, 3
      %s1167 = smul.addr %s1166, 4
      %s1168 = scalar_lea.vmem %s6, %s1167
      // Predicated region
      $region45: #{mutan_forward.2} parent=43 // pred_check
        %p1169 = pneg %p171
      $region46: #{mutan_forward.2} parent=43 // pred_check_branch
        %1171 = sbr.rel (%p1169) target = $region48
      $region47: #{mutan_forward.2} parent=43 // pred_region
        %s1172 = smul.u32 2, %s17
      $region48: #{mutan_forward.2} parent=43 // pred_fallthru
        _
    $region44: #{mutan_forward.2} parent=5 // pred_fallthru
      _
    %p1173 = scmp.le.s32.totalorder 2, %s12
    // Predicated region
    $region49: #{mutan_forward.2} parent=5 // pred_check
      %p1174 = pneg %p1173
    $region50: #{mutan_forward.2} parent=5 // pred_check_branch
      %1176 = sbr.rel (%p1174) target = $region52
    $region51: #{mutan_forward.2} parent=5 // pred_region
      %s1177 = ssub.s32 %s12, 2
      // Predicated region
      $region53: #{mutan_forward.2} parent=51 // pred_check
        %p1178 = pneg %p177
      $region54: #{mutan_forward.2} parent=51 // pred_check_branch
        %1180 = sbr.rel (%p1178) target = $region56
      $region55: #{mutan_forward.2} parent=51 // pred_region
        %s1181 = smul.u32 2, %s18
        %p1182 = scmp.lt.s32.totalorder %s1181, 3
        %s1183 = scalar_select %p1182, %s1181, 3
        %s1184 = smul.addr %s1183, 4
        %s1185 = scalar_lea.vmem %s6, %s1184
      $region56: #{mutan_forward.2} parent=51 // pred_fallthru
        _
    $region52: #{mutan_forward.2} parent=5 // pred_fallthru
      _
  $region6: #{mutan_forward.2} parent=0 // loop_footer
    %s16 = sadd.s32 1, %s12
  $region7: #{mutan_forward.2} parent=0 // loop_footer_branch
    %11 = sbr.rel target = $region3
  $region8: #{mutan_forward.2} parent=0 // loop_exit
    _

</llo_original>
